<compile_context>
chip_gen: v5e
topology: v5e:2x2
jax: 0.10.0
libtpu: 0.0.40
codegen_flags: <defaults>
</compile_context>

<pallas_src>
import jax
import jax.numpy as jnp
from jax.experimental import pallas as pl
from jax.experimental.pallas import tpu as pltpu


# -----------------------------------------------------------------------------
# Fused conv-stack kernel.
#
# Layer-l output for image b at (oh, ow) sits at flat row b*HsWsp + oh*Ws + ow,
# so every 2x2 / 3x3 tap of every image of the block is ONE contiguous row
# slice of the previous layer.  Columns ow in [OW_l, Ws) are wrap-around
# garbage but never feed a valid output (valid layer-(l+1) reads stay below
# column OW_l because OW_{l+1} + 2 == OW_l and Ws = OW1 + 1).
# -----------------------------------------------------------------------------
def _make_fused_cnn_kernel(TB, stride, offs1, offs3x3, M1, M2, M3, L3,
                           c1, c2, c1in):
    def kernel(x_ref, w1_ref, b1_ref, w2_ref, b2_ref, w3_ref, b3_ref, o_ref,
               lhs1_ref, lhs2_ref, lhs3_ref):
        # conv1: stride-2 4x4 folded to stride-1 2x2 over s2d input, K = 4*c1in.
        for t, s in enumerate(offs1):
            lhs1_ref[:, t * c1in:(t + 1) * c1in] = x_ref[s:s + M1, :]
        h1 = jnp.dot(lhs1_ref[...], w1_ref[...], preferred_element_type=jnp.float32)
        h1 = jnp.maximum(h1 + b1_ref[...], 0.0).astype(lhs2_ref.dtype)

        # conv2: 3x3, K = 9*32 = 288.
        for t, s in enumerate(offs3x3):
            lhs2_ref[:, t * c1:(t + 1) * c1] = h1[s:s + M2, :]
        h2 = jnp.dot(lhs2_ref[...], w2_ref[...], preferred_element_type=jnp.float32)
        h2 = jnp.maximum(h2 + b2_ref[...], 0.0).astype(lhs3_ref.dtype)

        # conv3: 3x3, K = 9*64 = 576.
        for t, s in enumerate(offs3x3):
            lhs3_ref[:, t * c2:(t + 1) * c2] = h2[s:s + M3, :]
        h3 = jnp.dot(lhs3_ref[...], w3_ref[...], preferred_element_type=jnp.float32)
        h3 = jnp.maximum(h3 + b3_ref[...], 0.0)

        # Per-image writeback of the leading L3 flat rows (f32).  The tiny
        # valid-row gather + torch-order flatten happen once in the wrapper.
        for b in range(TB):
            o_ref[b, :, :] = h3[b * stride:b * stride + L3, :]

    return kernel


# -----------------------------------------------------------------------------
# CNN_Small forward
# -----------------------------------------------------------------------------
def init_params(d_in, key):
    """d_in = (C, H, W). Deterministic (scaled-normal) init; shapes match torch."""
    c, h, w = d_in
    assert h >= 12 and w >= 12
    k1, k2, k3, k4, k5, k6 = jax.random.split(key, 6)
    # TODO(synk): torch uses orthogonal_init; synthetic scaled-normal init used here.
    return {
        "w1": jax.random.normal(k1, (32, c, 4, 4), jnp.float32) * 0.05,
        "b1": jax.random.normal(k2, (32,), jnp.float32) * 0.01,
        "w2": jax.random.normal(k3, (64, 32, 3, 3), jnp.float32) * 0.05,
        "b2": jax.random.normal(k4, (64,), jnp.float32) * 0.01,
        "w3": jax.random.normal(k5, (64, 64, 3, 3), jnp.float32) * 0.05,
        "b3": jax.random.normal(k6, (64,), jnp.float32) * 0.01,
    }


def cnn_small_forward(params, x, compute_dtype=jnp.bfloat16, images_per_step=None):
    """x: [N, C, H, W] or [B, S, C, H, W] (NCHW). Returns torch-order features."""
    is_seq = x.ndim == 5
    if is_seq:
        bsz, seq = x.shape[0], x.shape[1]
        x = x.reshape((-1,) + x.shape[2:])
    N, C, H, W = x.shape
    assert H >= 12 and W >= 12

    # Layer output sizes (identical to the torch module).
    OH1, OW1 = (H - 4) // 2 + 1, (W - 4) // 2 + 1
    OH2, OW2 = OH1 - 2, OW1 - 2
    OH3, OW3 = OH2 - 2, OW2 - 2
    Hs, Ws = OH1 + 1, OW1 + 1                  # s2d grid (one spare row/col)
    HsWs = Hs * Ws
    HsWsp = ((HsWs + 7) // 8) * 8              # per-image row stride (sublane aligned)

    # Wrap-around-garbage safety (see kernel comment).
    assert OW1 < Ws and OW2 + 2 == OW1 and OW3 + 2 == OW2

    # Per-image flat-row counts each layer must produce on the Ws-wide grid.
    L1 = (OH1 - 1) * Ws + OW1
    L2 = (OH2 - 1) * Ws + OW2
    L3 = (OH3 - 1) * Ws + OW3

    c1, c2, c3 = 32, 64, 64
    c1in = 4 * C                               # space-to-depth channels
    K1, K2, K3 = 4 * c1in, 9 * c1, 9 * c2      # folded contraction depths

    # ---- TB images per grid step: amortize per-step overhead, keep >=2 grid
    # steps (feeds both v7x TensorCores), and keep the VMEM working set small.
    if images_per_step is None:
        TB = min(8, max(1, N // 2))
        per_img = HsWsp * ((K1 + K2 + K3) * 2 + 2 * c1in * 2 + 2 * c3 * 4)
        while TB > 1 and TB * per_img > 12 * 1024 * 1024:
            TB -= 1
    else:
        TB = max(1, int(images_per_step))
    G = -(-N // TB)                            # grid steps
    N_pad = G * TB

    # ---- input prep: cast to bf16 FIRST (halves transpose bytes), crop to the
    # used region, then NCHW -> 2x2 space-to-depth NHWC in a single transpose.
    xc = x.astype(compute_dtype)[:, :, :2 * Hs, :2 * Ws]
    xs = xc.reshape(N, C, Hs, 2, Ws, 2)                    # (n, c, i, a, j, b)
    xs = jnp.transpose(xs, (0, 2, 4, 3, 5, 1))             # (n, i, j, a, b, c)
    xs = xs.reshape(N, HsWs, c1in)
    if HsWsp != HsWs:
        xs = jnp.pad(xs, ((0, 0), (0, HsWsp - HsWs), (0, 0)))
    if N_pad != N:
        xs = jnp.pad(xs, ((0, N_pad - N), (0, 0), (0, 0)))
    x2d = xs.reshape(N_pad * HsWsp, c1in)

    # ---- weights: fold every tap into the contraction dim, matching the lane
    # order the kernel uses when building the im2col scratch.
    w1, w2, w3 = params["w1"], params["w2"], params["w3"]
    # conv1: w1f[(2p+q)*4C + (2a+b)*C + ci, co] = w1[co, ci, 2p+a, 2q+b]
    w1f = jnp.transpose(w1, (2, 3, 1, 0)).reshape(2, 2, 2, 2, C, c1)  # (p,a,q,b,ci,co)
    w1f = jnp.transpose(w1f, (0, 2, 1, 3, 4, 5)).reshape(K1, c1).astype(compute_dtype)
    # conv2/conv3: wf[(3*kh+kw)*Cin + ci, co] = w[co, ci, kh, kw]
    w2f = jnp.transpose(w2, (2, 3, 1, 0)).reshape(K2, c2).astype(compute_dtype)
    w3f = jnp.transpose(w3, (2, 3, 1, 0)).reshape(K3, c3).astype(compute_dtype)
    b1 = params["b1"].reshape(1, c1).astype(jnp.float32)
    b2 = params["b2"].reshape(1, c2).astype(jnp.float32)
    b3 = params["b3"].reshape(1, c3).astype(jnp.float32)

    # ---- fused kernel call.
    M1 = (TB - 1) * HsWsp + L1                 # rows computed per layer per step
    M2 = (TB - 1) * HsWsp + L2
    M3 = (TB - 1) * HsWsp + L3
    offs1 = tuple(p * Ws + q for p in range(2) for q in range(2))
    offs3x3 = tuple(kh * Ws + kw for kh in range(3) for kw in range(3))
    kernel = _make_fused_cnn_kernel(TB, HsWsp, offs1, offs3x3,
                                    M1, M2, M3, L3, c1, c2, c1in)

    flops = 2 * G * (M1 * K1 * c1 + M2 * K2 * c2 + M3 * K3 * c3)
    bytes_accessed = (x2d.size * x2d.dtype.itemsize
                      + sum(int(a.size) * a.dtype.itemsize
                            for a in (w1f, b1, w2f, b2, w3f, b3))
                      + N_pad * L3 * c3 * 4)

    out_full = pl.pallas_call(
        kernel,
        out_shape=jax.ShapeDtypeStruct((N_pad, L3, c3), jnp.float32),
        grid=(G,),
        in_specs=[
            pl.BlockSpec((TB * HsWsp, c1in), lambda n: (n, 0)),
            pl.BlockSpec(w1f.shape, lambda n: (0, 0)),   # constant index maps ->
            pl.BlockSpec(b1.shape, lambda n: (0, 0)),    # fetched once, never re-DMA'd
            pl.BlockSpec(w2f.shape, lambda n: (0, 0)),
            pl.BlockSpec(b2.shape, lambda n: (0, 0)),
            pl.BlockSpec(w3f.shape, lambda n: (0, 0)),
            pl.BlockSpec(b3.shape, lambda n: (0, 0)),
        ],
        out_specs=pl.BlockSpec((TB, L3, c3), lambda n: (n, 0, 0)),
        scratch_shapes=[
            pltpu.VMEM((M1, K1), compute_dtype),   # conv1 im2col (K folded)
            pltpu.VMEM((M2, K2), compute_dtype),   # conv2 im2col
            pltpu.VMEM((M3, K3), compute_dtype),   # conv3 im2col
        ],
        compiler_params=pltpu.CompilerParams(dimension_semantics=("parallel",)),
        cost_estimate=pl.CostEstimate(flops=flops, transcendentals=0,
                                      bytes_accessed=int(bytes_accessed)),
    )(x2d, w1f, b1, w2f, b2, w3f, b3)

    # ---- tiny epilogue on the result: pick the OH3*OW3 valid rows, then
    # NCHW-order flatten (matches torch's x.view(N, -1)).
    row_idx = jnp.asarray([oh * Ws + ow for oh in range(OH3) for ow in range(OW3)],
                          dtype=jnp.int32)
    out = out_full[:N, row_idx, :]                               # [N, OH3*OW3, c3]
    out = jnp.transpose(out, (0, 2, 1)).reshape(N, c3 * OH3 * OW3)
    if is_seq:
        out = out.reshape(bsz, seq, -1)
    return out


# -----------------------------------------------------------------------------
# Reference (pure JAX, f32) for correctness checking
# -----------------------------------------------------------------------------
def _ref_forward(params, x):
    def conv(x, w, b, stride):
        y = jax.lax.conv_general_dilated(
            x, w, window_strides=(stride, stride), padding="VALID",
            dimension_numbers=("NCHW", "OIHW", "NCHW"))
        return jnp.maximum(y + b[None, :, None, None], 0.0)

    x = conv(x, params["w1"], params["b1"], 2)
    x = conv(x, params["w2"], params["b2"], 1)
    x = conv(x, params["w3"], params["b3"], 1)
    return x.reshape(x.shape[0], -1)


if __name__ == "__main__":
    key = jax.random.PRNGKey(0)
    k_param, k_x = jax.random.split(key)

    N, C, H, W = 2, 4, 16, 16          # D_in = (4, 16, 16) -> D_head_out = 576
    params = init_params((C, H, W), k_param)
    x = jax.random.normal(k_x, (N, C, H, W), jnp.float32)

    fwd = jax.jit(cnn_small_forward)
    out = jax.block_until_ready(fwd(params, x))
    ref = jax.block_until_ready(_ref_forward(params, x))

    assert out.shape == (N, 64 * 3 * 3), out.shape
    # bf16 MXU operands / bf16 intermediates with f32 accumulation -> relaxed
    # tolerance vs the f32 reference.
    assert jnp.allclose(out, ref, atol=3e-2, rtol=3e-2), (
        "mismatch vs reference, max abs err = %f"
        % float(jnp.max(jnp.abs(out - ref))))

    # [B, S, C, H, W] sequence path must match the flat path exactly.
    x5 = x.reshape(1, 2, C, H, W)
    out5 = jax.block_until_ready(fwd(params, x5))
    assert out5.shape == (1, 2, 64 * 3 * 3), out5.shape
    assert jnp.allclose(out5.reshape(2, -1), out), "5D path mismatch"

    print("KERNEL_OK")
</pallas_src>

<mosaic_0001>
module attributes {stable_mosaic.version = 11 : i64} {
  func.func @kernel(%arg0: i32, %arg1: memref<64x16xbf16, #tpu.memory_space<vmem>>, %arg2: memref<64x32xbf16, #tpu.memory_space<vmem>>, %arg3: memref<1x32xf32, #tpu.memory_space<vmem>>, %arg4: memref<288x64xbf16, #tpu.memory_space<vmem>>, %arg5: memref<1x64xf32, #tpu.memory_space<vmem>>, %arg6: memref<576x64xbf16, #tpu.memory_space<vmem>>, %arg7: memref<1x64xf32, #tpu.memory_space<vmem>>, %arg8: memref<1x19x64xf32, #tpu.memory_space<vmem>>, %arg9: memref<55x64xbf16, #tpu.memory_space<vmem>>, %arg10: memref<37x288xbf16, #tpu.memory_space<vmem>>, %arg11: memref<19x576xbf16, #tpu.memory_space<vmem>>) attributes {dimension_semantics = [#tpu.dimension_semantics<parallel>], iteration_bounds = array<i64: 2>, scalar_prefetch = 0 : i64, scratch_operands = 3 : i64, tpu.core_type = #tpu.core_type<tc>, window_params = [{transform_indices = @transform_0, window_bounds = array<i64: 64, 16>}, {pipeline_mode = #tpu.pipeline_mode<synchronous>, transform_indices = @transform_1, window_bounds = array<i64: 64, 32>}, {pipeline_mode = #tpu.pipeline_mode<synchronous>, transform_indices = @transform_2, window_bounds = array<i64: 1, 32>}, {pipeline_mode = #tpu.pipeline_mode<synchronous>, transform_indices = @transform_3, window_bounds = array<i64: 288, 64>}, {pipeline_mode = #tpu.pipeline_mode<synchronous>, transform_indices = @transform_4, window_bounds = array<i64: 1, 64>}, {pipeline_mode = #tpu.pipeline_mode<synchronous>, transform_indices = @transform_5, window_bounds = array<i64: 576, 64>}, {pipeline_mode = #tpu.pipeline_mode<synchronous>, transform_indices = @transform_6, window_bounds = array<i64: 1, 64>}, {transform_indices = @transform_7, window_bounds = array<i64: 1, 19, 64>}]} {
    %c0 = arith.constant 0 : index
    %c0_0 = arith.constant 0 : index
    %0 = vector.load %arg1[%c0, %c0_0] : memref<64x16xbf16, #tpu.memory_space<vmem>>, vector<55x16xbf16>
    %c0_1 = arith.constant 0 : index
    %c0_2 = arith.constant 0 : index
    %1 = vector.load %arg9[%c0_1, %c0_2] : memref<55x64xbf16, #tpu.memory_space<vmem>>, vector<55x16xbf16>
    tpu.vector_store %arg9[%c0_1, %c0_2], %0 {strides = array<i32>} : memref<55x64xbf16, #tpu.memory_space<vmem>>, vector<55x16xbf16>,
    %c1 = arith.constant 1 : index
    %c0_3 = arith.constant 0 : index
    %2 = vector.load %arg1[%c1, %c0_3] : memref<64x16xbf16, #tpu.memory_space<vmem>>, vector<55x16xbf16>
    %c0_4 = arith.constant 0 : index
    %c16 = arith.constant 16 : index
    %3 = vector.load %arg9[%c0_4, %c16] : memref<55x64xbf16, #tpu.memory_space<vmem>>, vector<55x16xbf16>
    tpu.vector_store %arg9[%c0_4, %c16], %2 {strides = array<i32>} : memref<55x64xbf16, #tpu.memory_space<vmem>>, vector<55x16xbf16>,
    %c8 = arith.constant 8 : index
    %c0_5 = arith.constant 0 : index
    %4 = vector.load %arg1[%c8, %c0_5] : memref<64x16xbf16, #tpu.memory_space<vmem>>, vector<55x16xbf16>
    %c0_6 = arith.constant 0 : index
    %c32 = arith.constant 32 : index
    %5 = vector.load %arg9[%c0_6, %c32] : memref<55x64xbf16, #tpu.memory_space<vmem>>, vector<55x16xbf16>
    tpu.vector_store %arg9[%c0_6, %c32], %4 {strides = array<i32>} : memref<55x64xbf16, #tpu.memory_space<vmem>>, vector<55x16xbf16>,
    %c9 = arith.constant 9 : index
    %c0_7 = arith.constant 0 : index
    %6 = vector.load %arg1[%c9, %c0_7] : memref<64x16xbf16, #tpu.memory_space<vmem>>, vector<55x16xbf16>
    %c0_8 = arith.constant 0 : index
    %c48 = arith.constant 48 : index
    %7 = vector.load %arg9[%c0_8, %c48] : memref<55x64xbf16, #tpu.memory_space<vmem>>, vector<55x16xbf16>
    tpu.vector_store %arg9[%c0_8, %c48], %6 {strides = array<i32>} : memref<55x64xbf16, #tpu.memory_space<vmem>>, vector<55x16xbf16>,
    %c0_9 = arith.constant 0 : index
    %c0_10 = arith.constant 0 : index
    %8 = vector.load %arg9[%c0_9, %c0_10] : memref<55x64xbf16, #tpu.memory_space<vmem>>, vector<55x64xbf16>
    %c0_11 = arith.constant 0 : index
    %c0_12 = arith.constant 0 : index
    %9 = vector.load %arg2[%c0_11, %c0_12] : memref<64x32xbf16, #tpu.memory_space<vmem>>, vector<64x32xbf16>
    %cst = arith.constant dense<0.000000e+00> : vector<55x32xf32>
    %10 = tpu.matmul %8, %9, %cst {dimension_numbers = #tpu.dot_dimension_numbers<[1], [0], [0], [1], [0, 0, 1, 1], [], []>} : vector<55x64xbf16>, vector<64x32xbf16>, vector<55x32xf32> -> vector<55x32xf32>
    %c0_13 = arith.constant 0 : index
    %c0_14 = arith.constant 0 : index
    %11 = vector.load %arg3[%c0_13, %c0_14] : memref<1x32xf32, #tpu.memory_space<vmem>>, vector<1x32xf32>
    %12 = vector.broadcast %11 : vector<1x32xf32> to vector<55x32xf32>
    %13 = arith.addf %10, %12 : vector<55x32xf32>
    %cst_15 = arith.constant 0.000000e+00 : f32
    %14 = vector.broadcast %cst_15 : f32 to vector<55x32xf32>
    %15 = arith.maximumf %13, %14 : vector<55x32xf32>
    %16 = arith.truncf %15 : vector<55x32xf32> to vector<55x32xbf16>
    %17 = vector.extract_strided_slice %16 {offsets = [0, 0], sizes = [37, 32], strides = [1, 1]} : vector<55x32xbf16> to vector<37x32xbf16>
    %c0_16 = arith.constant 0 : index
    %c0_17 = arith.constant 0 : index
    %18 = vector.load %arg10[%c0_16, %c0_17] : memref<37x288xbf16, #tpu.memory_space<vmem>>, vector<37x32xbf16>
    tpu.vector_store %arg10[%c0_16, %c0_17], %17 {strides = array<i32>} : memref<37x288xbf16, #tpu.memory_space<vmem>>, vector<37x32xbf16>,
    %19 = vector.extract_strided_slice %16 {offsets = [1, 0], sizes = [37, 32], strides = [1, 1]} : vector<55x32xbf16> to vector<37x32xbf16>
    %c0_18 = arith.constant 0 : index
    %c32_19 = arith.constant 32 : index
    %20 = vector.load %arg10[%c0_18, %c32_19] : memref<37x288xbf16, #tpu.memory_space<vmem>>, vector<37x32xbf16>
    tpu.vector_store %arg10[%c0_18, %c32_19], %19 {strides = array<i32>} : memref<37x288xbf16, #tpu.memory_space<vmem>>, vector<37x32xbf16>,
    %21 = vector.extract_strided_slice %16 {offsets = [2, 0], sizes = [37, 32], strides = [1, 1]} : vector<55x32xbf16> to vector<37x32xbf16>
    %c0_20 = arith.constant 0 : index
    %c64 = arith.constant 64 : index
    %22 = vector.load %arg10[%c0_20, %c64] : memref<37x288xbf16, #tpu.memory_space<vmem>>, vector<37x32xbf16>
    tpu.vector_store %arg10[%c0_20, %c64], %21 {strides = array<i32>} : memref<37x288xbf16, #tpu.memory_space<vmem>>, vector<37x32xbf16>,
    %23 = vector.extract_strided_slice %16 {offsets = [8, 0], sizes = [37, 32], strides = [1, 1]} : vector<55x32xbf16> to vector<37x32xbf16>
    %c0_21 = arith.constant 0 : index
    %c96 = arith.constant 96 : index
    %24 = vector.load %arg10[%c0_21, %c96] : memref<37x288xbf16, #tpu.memory_space<vmem>>, vector<37x32xbf16>
    tpu.vector_store %arg10[%c0_21, %c96], %23 {strides = array<i32>} : memref<37x288xbf16, #tpu.memory_space<vmem>>, vector<37x32xbf16>,
    %25 = vector.extract_strided_slice %16 {offsets = [9, 0], sizes = [37, 32], strides = [1, 1]} : vector<55x32xbf16> to vector<37x32xbf16>
    %c0_22 = arith.constant 0 : index
    %c128 = arith.constant 128 : index
    %26 = vector.load %arg10[%c0_22, %c128] : memref<37x288xbf16, #tpu.memory_space<vmem>>, vector<37x32xbf16>
    tpu.vector_store %arg10[%c0_22, %c128], %25 {strides = array<i32>} : memref<37x288xbf16, #tpu.memory_space<vmem>>, vector<37x32xbf16>,
    %27 = vector.extract_strided_slice %16 {offsets = [10, 0], sizes = [37, 32], strides = [1, 1]} : vector<55x32xbf16> to vector<37x32xbf16>
    %c0_23 = arith.constant 0 : index
    %c160 = arith.constant 160 : index
    %28 = vector.load %arg10[%c0_23, %c160] : memref<37x288xbf16, #tpu.memory_space<vmem>>, vector<37x32xbf16>
    tpu.vector_store %arg10[%c0_23, %c160], %27 {strides = array<i32>} : memref<37x288xbf16, #tpu.memory_space<vmem>>, vector<37x32xbf16>,
    %29 = vector.extract_strided_slice %16 {offsets = [16, 0], sizes = [37, 32], strides = [1, 1]} : vector<55x32xbf16> to vector<37x32xbf16>
    %c0_24 = arith.constant 0 : index
    %c192 = arith.constant 192 : index
    %30 = vector.load %arg10[%c0_24, %c192] : memref<37x288xbf16, #tpu.memory_space<vmem>>, vector<37x32xbf16>
    tpu.vector_store %arg10[%c0_24, %c192], %29 {strides = array<i32>} : memref<37x288xbf16, #tpu.memory_space<vmem>>, vector<37x32xbf16>,
    %31 = vector.extract_strided_slice %16 {offsets = [17, 0], sizes = [37, 32], strides = [1, 1]} : vector<55x32xbf16> to vector<37x32xbf16>
    %c0_25 = arith.constant 0 : index
    %c224 = arith.constant 224 : index
    %32 = vector.load %arg10[%c0_25, %c224] : memref<37x288xbf16, #tpu.memory_space<vmem>>, vector<37x32xbf16>
    tpu.vector_store %arg10[%c0_25, %c224], %31 {strides = array<i32>} : memref<37x288xbf16, #tpu.memory_space<vmem>>, vector<37x32xbf16>,
    %33 = vector.extract_strided_slice %16 {offsets = [18, 0], sizes = [37, 32], strides = [1, 1]} : vector<55x32xbf16> to vector<37x32xbf16>
    %c0_26 = arith.constant 0 : index
    %c256 = arith.constant 256 : index
    %34 = vector.load %arg10[%c0_26, %c256] : memref<37x288xbf16, #tpu.memory_space<vmem>>, vector<37x32xbf16>
    tpu.vector_store %arg10[%c0_26, %c256], %33 {strides = array<i32>} : memref<37x288xbf16, #tpu.memory_space<vmem>>, vector<37x32xbf16>,
    %c0_27 = arith.constant 0 : index
    %c0_28 = arith.constant 0 : index
    %35 = vector.load %arg10[%c0_27, %c0_28] : memref<37x288xbf16, #tpu.memory_space<vmem>>, vector<37x288xbf16>
    %c0_29 = arith.constant 0 : index
    %c0_30 = arith.constant 0 : index
    %36 = vector.load %arg4[%c0_29, %c0_30] : memref<288x64xbf16, #tpu.memory_space<vmem>>, vector<288x64xbf16>
    %cst_31 = arith.constant dense<0.000000e+00> : vector<37x64xf32>
    %37 = tpu.matmul %35, %36, %cst_31 {dimension_numbers = #tpu.dot_dimension_numbers<[1], [0], [0], [1], [0, 0, 1, 1], [], []>} : vector<37x288xbf16>, vector<288x64xbf16>, vector<37x64xf32> -> vector<37x64xf32>
    %c0_32 = arith.constant 0 : index
    %c0_33 = arith.constant 0 : index
    %38 = vector.load %arg5[%c0_32, %c0_33] : memref<1x64xf32, #tpu.memory_space<vmem>>, vector<1x64xf32>
    %39 = vector.broadcast %38 : vector<1x64xf32> to vector<37x64xf32>
    %40 = arith.addf %37, %39 : vector<37x64xf32>
    %cst_34 = arith.constant 0.000000e+00 : f32
    %41 = vector.broadcast %cst_34 : f32 to vector<37x64xf32>
    %42 = arith.maximumf %40, %41 : vector<37x64xf32>
    %43 = arith.truncf %42 : vector<37x64xf32> to vector<37x64xbf16>
    %44 = vector.extract_strided_slice %43 {offsets = [0, 0], sizes = [19, 64], strides = [1, 1]} : vector<37x64xbf16> to vector<19x64xbf16>
    %c0_35 = arith.constant 0 : index
    %c0_36 = arith.constant 0 : index
    %45 = vector.load %arg11[%c0_35, %c0_36] : memref<19x576xbf16, #tpu.memory_space<vmem>>, vector<19x64xbf16>
    tpu.vector_store %arg11[%c0_35, %c0_36], %44 {strides = array<i32>} : memref<19x576xbf16, #tpu.memory_space<vmem>>, vector<19x64xbf16>,
    %46 = vector.extract_strided_slice %43 {offsets = [1, 0], sizes = [19, 64], strides = [1, 1]} : vector<37x64xbf16> to vector<19x64xbf16>
    %c0_37 = arith.constant 0 : index
    %c64_38 = arith.constant 64 : index
    %47 = vector.load %arg11[%c0_37, %c64_38] : memref<19x576xbf16, #tpu.memory_space<vmem>>, vector<19x64xbf16>
    tpu.vector_store %arg11[%c0_37, %c64_38], %46 {strides = array<i32>} : memref<19x576xbf16, #tpu.memory_space<vmem>>, vector<19x64xbf16>,
    %48 = vector.extract_strided_slice %43 {offsets = [2, 0], sizes = [19, 64], strides = [1, 1]} : vector<37x64xbf16> to vector<19x64xbf16>
    %c0_39 = arith.constant 0 : index
    %c128_40 = arith.constant 128 : index
    %49 = vector.load %arg11[%c0_39, %c128_40] : memref<19x576xbf16, #tpu.memory_space<vmem>>, vector<19x64xbf16>
    tpu.vector_store %arg11[%c0_39, %c128_40], %48 {strides = array<i32>} : memref<19x576xbf16, #tpu.memory_space<vmem>>, vector<19x64xbf16>,
    %50 = vector.extract_strided_slice %43 {offsets = [8, 0], sizes = [19, 64], strides = [1, 1]} : vector<37x64xbf16> to vector<19x64xbf16>
    %c0_41 = arith.constant 0 : index
    %c192_42 = arith.constant 192 : index
    %51 = vector.load %arg11[%c0_41, %c192_42] : memref<19x576xbf16, #tpu.memory_space<vmem>>, vector<19x64xbf16>
    tpu.vector_store %arg11[%c0_41, %c192_42], %50 {strides = array<i32>} : memref<19x576xbf16, #tpu.memory_space<vmem>>, vector<19x64xbf16>,
    %52 = vector.extract_strided_slice %43 {offsets = [9, 0], sizes = [19, 64], strides = [1, 1]} : vector<37x64xbf16> to vector<19x64xbf16>
    %c0_43 = arith.constant 0 : index
    %c256_44 = arith.constant 256 : index
    %53 = vector.load %arg11[%c0_43, %c256_44] : memref<19x576xbf16, #tpu.memory_space<vmem>>, vector<19x64xbf16>
    tpu.vector_store %arg11[%c0_43, %c256_44], %52 {strides = array<i32>} : memref<19x576xbf16, #tpu.memory_space<vmem>>, vector<19x64xbf16>,
    %54 = vector.extract_strided_slice %43 {offsets = [10, 0], sizes = [19, 64], strides = [1, 1]} : vector<37x64xbf16> to vector<19x64xbf16>
    %c0_45 = arith.constant 0 : index
    %c320 = arith.constant 320 : index
    %55 = vector.load %arg11[%c0_45, %c320] : memref<19x576xbf16, #tpu.memory_space<vmem>>, vector<19x64xbf16>
    tpu.vector_store %arg11[%c0_45, %c320], %54 {strides = array<i32>} : memref<19x576xbf16, #tpu.memory_space<vmem>>, vector<19x64xbf16>,
    %56 = vector.extract_strided_slice %43 {offsets = [16, 0], sizes = [19, 64], strides = [1, 1]} : vector<37x64xbf16> to vector<19x64xbf16>
    %c0_46 = arith.constant 0 : index
    %c384 = arith.constant 384 : index
    %57 = vector.load %arg11[%c0_46, %c384] : memref<19x576xbf16, #tpu.memory_space<vmem>>, vector<19x64xbf16>
    tpu.vector_store %arg11[%c0_46, %c384], %56 {strides = array<i32>} : memref<19x576xbf16, #tpu.memory_space<vmem>>, vector<19x64xbf16>,
    %58 = vector.extract_strided_slice %43 {offsets = [17, 0], sizes = [19, 64], strides = [1, 1]} : vector<37x64xbf16> to vector<19x64xbf16>
    %c0_47 = arith.constant 0 : index
    %c448 = arith.constant 448 : index
    %59 = vector.load %arg11[%c0_47, %c448] : memref<19x576xbf16, #tpu.memory_space<vmem>>, vector<19x64xbf16>
    tpu.vector_store %arg11[%c0_47, %c448], %58 {strides = array<i32>} : memref<19x576xbf16, #tpu.memory_space<vmem>>, vector<19x64xbf16>,
    %60 = vector.extract_strided_slice %43 {offsets = [18, 0], sizes = [19, 64], strides = [1, 1]} : vector<37x64xbf16> to vector<19x64xbf16>
    %c0_48 = arith.constant 0 : index
    %c512 = arith.constant 512 : index
    %61 = vector.load %arg11[%c0_48, %c512] : memref<19x576xbf16, #tpu.memory_space<vmem>>, vector<19x64xbf16>
    tpu.vector_store %arg11[%c0_48, %c512], %60 {strides = array<i32>} : memref<19x576xbf16, #tpu.memory_space<vmem>>, vector<19x64xbf16>,
    %c0_49 = arith.constant 0 : index
    %c0_50 = arith.constant 0 : index
    %62 = vector.load %arg11[%c0_49, %c0_50] : memref<19x576xbf16, #tpu.memory_space<vmem>>, vector<19x576xbf16>
    %c0_51 = arith.constant 0 : index
    %c0_52 = arith.constant 0 : index
    %63 = vector.load %arg6[%c0_51, %c0_52] : memref<576x64xbf16, #tpu.memory_space<vmem>>, vector<576x64xbf16>
    %cst_53 = arith.constant dense<0.000000e+00> : vector<19x64xf32>
    %64 = tpu.matmul %62, %63, %cst_53 {dimension_numbers = #tpu.dot_dimension_numbers<[1], [0], [0], [1], [0, 0, 1, 1], [], []>} : vector<19x576xbf16>, vector<576x64xbf16>, vector<19x64xf32> -> vector<19x64xf32>
    %c0_54 = arith.constant 0 : index
    %c0_55 = arith.constant 0 : index
    %65 = vector.load %arg7[%c0_54, %c0_55] : memref<1x64xf32, #tpu.memory_space<vmem>>, vector<1x64xf32>
    %66 = vector.broadcast %65 : vector<1x64xf32> to vector<19x64xf32>
    %67 = arith.addf %64, %66 : vector<19x64xf32>
    %cst_56 = arith.constant 0.000000e+00 : f32
    %68 = vector.broadcast %cst_56 : f32 to vector<19x64xf32>
    %69 = arith.maximumf %67, %68 : vector<19x64xf32>
    %c0_57 = arith.constant 0 : index
    %c0_58 = arith.constant 0 : index
    %c0_59 = arith.constant 0 : index
    %70 = vector.load %arg8[%c0_57, %c0_58, %c0_59] : memref<1x19x64xf32, #tpu.memory_space<vmem>>, vector<1x19x64xf32>
    %71 = vector.shape_cast %70 : vector<1x19x64xf32> to vector<19x64xf32>
    %72 = vector.shape_cast %69 : vector<19x64xf32> to vector<1x19x64xf32>
    tpu.vector_store %arg8[%c0_57, %c0_58, %c0_59], %72 {strides = array<i32>} : memref<1x19x64xf32, #tpu.memory_space<vmem>>, vector<1x19x64xf32>,
    return
  }
  func.func @transform_0(%arg0: i32) -> (i32, i32) {
    %c0_i32 = arith.constant 0 : i32
    %c0_i32_0 = arith.constant 0 : i32
    return %arg0, %c0_i32 : i32, i32
  }
  func.func @transform_1(%arg0: i32) -> (i32, i32) {
    %c0_i32 = arith.constant 0 : i32
    %c0_i32_0 = arith.constant 0 : i32
    %c0_i32_1 = arith.constant 0 : i32
    return %c0_i32, %c0_i32_0 : i32, i32
  }
  func.func @transform_2(%arg0: i32) -> (i32, i32) {
    %c0_i32 = arith.constant 0 : i32
    %c0_i32_0 = arith.constant 0 : i32
    %c0_i32_1 = arith.constant 0 : i32
    return %c0_i32, %c0_i32_0 : i32, i32
  }
  func.func @transform_3(%arg0: i32) -> (i32, i32) {
    %c0_i32 = arith.constant 0 : i32
    %c0_i32_0 = arith.constant 0 : i32
    %c0_i32_1 = arith.constant 0 : i32
    return %c0_i32, %c0_i32_0 : i32, i32
  }
  func.func @transform_4(%arg0: i32) -> (i32, i32) {
    %c0_i32 = arith.constant 0 : i32
    %c0_i32_0 = arith.constant 0 : i32
    %c0_i32_1 = arith.constant 0 : i32
    return %c0_i32, %c0_i32_0 : i32, i32
  }
  func.func @transform_5(%arg0: i32) -> (i32, i32) {
    %c0_i32 = arith.constant 0 : i32
    %c0_i32_0 = arith.constant 0 : i32
    %c0_i32_1 = arith.constant 0 : i32
    return %c0_i32, %c0_i32_0 : i32, i32
  }
  func.func @transform_6(%arg0: i32) -> (i32, i32) {
    %c0_i32 = arith.constant 0 : i32
    %c0_i32_0 = arith.constant 0 : i32
    %c0_i32_1 = arith.constant 0 : i32
    return %c0_i32, %c0_i32_0 : i32, i32
  }
  func.func @transform_7(%arg0: i32) -> (i32, i32, i32) {
    %c0_i32 = arith.constant 0 : i32
    %c0_i32_0 = arith.constant 0 : i32
    %c0_i32_1 = arith.constant 0 : i32
    return %arg0, %c0_i32, %c0_i32_0 : i32, i32, i32
  }
}

</mosaic_0001>

<llo_original>
// kernel: cnn_small_forward.1
$region0: #{cnn_small_forward.1}
  #allocation0 [shape = 'u32[]', space=smem, size = 0x4, offset = 0x4, fixed_abs, tag = 'smem constant byte address 0x4 - core index']
  #allocation1 [shape = 'u32[72,128]{1,0:T(1,128)}', space=vmem, size = 0x9000, scoped, tag = 'internal scratch']
  #allocation2 [shape = 'bf16[55,64]{1,0:T(8,128)(2,1)}', space=vmem, size = 0x3800, scoped, tag = 'scratch operand']
  #allocation3 [shape = 'bf16[37,288]{1,0:T(8,128)(2,1)}', space=vmem, size = 0x7800, scoped, tag = 'scratch operand']
  #allocation4 [shape = 'bf16[19,576]{1,0:T(8,128)(2,1)}', space=vmem, size = 0x7800, scoped, tag = 'scratch operand']
  %s0 = inlined_call_operand.vmem [shape: bf16[128,16], index: 0, kind: input, shape index: {}]
  %s1 = inlined_call_operand.vmem [shape: bf16[64,32], index: 1, kind: input, shape index: {}]
  %s2 = inlined_call_operand.vmem [shape: f32[1,32], index: 2, kind: input, shape index: {}]
  %s3 = inlined_call_operand.vmem [shape: bf16[288,64], index: 3, kind: input, shape index: {}]
  %s4 = inlined_call_operand.vmem [shape: f32[1,64], index: 4, kind: input, shape index: {}]
  %s5 = inlined_call_operand.vmem [shape: bf16[576,64], index: 5, kind: input, shape index: {}]
  %s6 = inlined_call_operand.vmem [shape: f32[1,64], index: 6, kind: input, shape index: {}]
  %s7 = inlined_call_operand.vmem [shape: f32[2,19,64], index: 7, kind: output, shape index: {}]
  %s8 = sld [smem:[#allocation0]]
  $region61: #{cnn_small_forward.1} parent=0
    _
  %s10 = ssub.s32 1, %s8
  %s11 = scalar_select 0, %s10, %s8
  loop: start=0, step=1, limit=4
  $region2: #{cnn_small_forward.1} parent=0 // loop_pre_header
    _
  $region3: #{cnn_small_forward.1} parent=0 // loop_header
    %s13 = sphi 0, %s17
    %p14 = scmp.ge.s32.totalorder %s13, 4
    %s23 = sphi 0, %s25
    %s26 = sphi 0, %s23
    %s27 = sphi 0, %s26
    %s43 = sphi 0, %s27
    %s47 = sphi 0, %s47
    %s49 = sphi 0, %s47
    %s50 = sphi 0, %s49
    %s64 = sphi 0, %s50
    %s68 = sphi 0, %s68
    %s70 = sphi 0, %s68
    %s71 = sphi 0, %s70
    %s85 = sphi 0, %s71
    %s89 = sphi 0, %s89
    %s91 = sphi 0, %s89
    %s92 = sphi 0, %s91
    %s106 = sphi 0, %s92
    %s110 = sphi 0, %s110
    %s112 = sphi 0, %s110
    %s113 = sphi 0, %s112
    %s127 = sphi 0, %s113
    %s131 = sphi 0, %s131
    %s133 = sphi 0, %s131
    %s134 = sphi 0, %s133
    %s148 = sphi 0, %s134
    %s152 = sphi 0, %s152
    %s154 = sphi 0, %s152
    %s155 = sphi 0, %s154
    %s169 = sphi 0, %s155
    %s175 = sphi 0, %s177
    %s178 = sphi 0, %s175
    %s179 = sphi 0, %s178
    %s195 = sphi 0, %s179
  $region4: #{cnn_small_forward.1} parent=0 // loop_header_branch
    %16 = sbr.rel (%p14) target = $region8
  $region5: #{cnn_small_forward.1} parent=0 // loop_body
    %s18 = ssub.s32 %s13, 1
    %s19 = ssub.s32 %s13, 2
    %s20 = sadd.s32 %s13, 1
    %s21 = ssub.s32 %s13, %s20
    %p22 = scmp.eq.s32.totalorder %s21, 0
    %s24 = sadd.s32 %s23, 1
    %s25 = scalar_select %p22, %s23, %s24
    %p28 = pneg %p22
    %p29 = scmp.eq.s32.totalorder %s13, 1
    %p30 = por %p28, %p29
    %p31 = scmp.ne.s32.totalorder %s23, %s26
    %p32 = scmp.eq.s32.totalorder %s13, 0
    %p33 = por %p31, %p32
    %p34 = scmp.ne.s32.totalorder %s23, %s26
    %p35 = scmp.eq.s32.totalorder %s18, 1
    %p36 = por %p34, %p35
    %p37 = scmp.ne.s32.totalorder %s26, %s27
    %p38 = scmp.eq.s32.totalorder %s18, 0
    %p39 = por %p37, %p38
    %p40 = scmp.ne.s32.totalorder %s26, %s27
    %p41 = scmp.eq.s32.totalorder %s19, 1
    %p42 = por %p40, %p41
    %p44 = scmp.ne.s32.totalorder %s27, %s43
    %p45 = scmp.eq.s32.totalorder %s19, 0
    %p46 = por %p44, %p45
    %s48 = sadd.s32 %s47, 1
    %p51 = scmp.eq.s32.totalorder %s13, 1
    %p52 = scmp.ne.s32.totalorder %s47, %s49
    %p53 = scmp.eq.s32.totalorder %s13, 0
    %p54 = por %p52, %p53
    %p55 = scmp.ne.s32.totalorder %s47, %s49
    %p56 = scmp.eq.s32.totalorder %s18, 1
    %p57 = por %p55, %p56
    %p58 = scmp.ne.s32.totalorder %s49, %s50
    %p59 = scmp.eq.s32.totalorder %s18, 0
    %p60 = por %p58, %p59
    %p61 = scmp.ne.s32.totalorder %s49, %s50
    %p62 = scmp.eq.s32.totalorder %s19, 1
    %p63 = por %p61, %p62
    %p65 = scmp.ne.s32.totalorder %s50, %s64
    %p66 = scmp.eq.s32.totalorder %s19, 0
    %p67 = por %p65, %p66
    %s69 = sadd.s32 %s68, 1
    %p72 = scmp.eq.s32.totalorder %s13, 1
    %p73 = scmp.ne.s32.totalorder %s68, %s70
    %p74 = scmp.eq.s32.totalorder %s13, 0
    %p75 = por %p73, %p74
    %p76 = scmp.ne.s32.totalorder %s68, %s70
    %p77 = scmp.eq.s32.totalorder %s18, 1
    %p78 = por %p76, %p77
    %p79 = scmp.ne.s32.totalorder %s70, %s71
    %p80 = scmp.eq.s32.totalorder %s18, 0
    %p81 = por %p79, %p80
    %p82 = scmp.ne.s32.totalorder %s70, %s71
    %p83 = scmp.eq.s32.totalorder %s19, 1
    %p84 = por %p82, %p83
    %p86 = scmp.ne.s32.totalorder %s71, %s85
    %p87 = scmp.eq.s32.totalorder %s19, 0
    %p88 = por %p86, %p87
    %s90 = sadd.s32 %s89, 1
    %p93 = scmp.eq.s32.totalorder %s13, 1
    %p94 = scmp.ne.s32.totalorder %s89, %s91
    %p95 = scmp.eq.s32.totalorder %s13, 0
    %p96 = por %p94, %p95
    %p97 = scmp.ne.s32.totalorder %s89, %s91
    %p98 = scmp.eq.s32.totalorder %s18, 1
    %p99 = por %p97, %p98
    %p100 = scmp.ne.s32.totalorder %s91, %s92
    %p101 = scmp.eq.s32.totalorder %s18, 0
    %p102 = por %p100, %p101
    %p103 = scmp.ne.s32.totalorder %s91, %s92
    %p104 = scmp.eq.s32.totalorder %s19, 1
    %p105 = por %p103, %p104
    %p107 = scmp.ne.s32.totalorder %s92, %s106
    %p108 = scmp.eq.s32.totalorder %s19, 0
    %p109 = por %p107, %p108
    %s111 = sadd.s32 %s110, 1
    %p114 = scmp.eq.s32.totalorder %s13, 1
    %p115 = scmp.ne.s32.totalorder %s110, %s112
    %p116 = scmp.eq.s32.totalorder %s13, 0
    %p117 = por %p115, %p116
    %p118 = scmp.ne.s32.totalorder %s110, %s112
    %p119 = scmp.eq.s32.totalorder %s18, 1
    %p120 = por %p118, %p119
    %p121 = scmp.ne.s32.totalorder %s112, %s113
    %p122 = scmp.eq.s32.totalorder %s18, 0
    %p123 = por %p121, %p122
    %p124 = scmp.ne.s32.totalorder %s112, %s113
    %p125 = scmp.eq.s32.totalorder %s19, 1
    %p126 = por %p124, %p125
    %p128 = scmp.ne.s32.totalorder %s113, %s127
    %p129 = scmp.eq.s32.totalorder %s19, 0
    %p130 = por %p128, %p129
    %s132 = sadd.s32 %s131, 1
    %p135 = scmp.eq.s32.totalorder %s13, 1
    %p136 = scmp.ne.s32.totalorder %s131, %s133
    %p137 = scmp.eq.s32.totalorder %s13, 0
    %p138 = por %p136, %p137
    %p139 = scmp.ne.s32.totalorder %s131, %s133
    %p140 = scmp.eq.s32.totalorder %s18, 1
    %p141 = por %p139, %p140
    %p142 = scmp.ne.s32.totalorder %s133, %s134
    %p143 = scmp.eq.s32.totalorder %s18, 0
    %p144 = por %p142, %p143
    %p145 = scmp.ne.s32.totalorder %s133, %s134
    %p146 = scmp.eq.s32.totalorder %s19, 1
    %p147 = por %p145, %p146
    %p149 = scmp.ne.s32.totalorder %s134, %s148
    %p150 = scmp.eq.s32.totalorder %s19, 0
    %p151 = por %p149, %p150
    %s153 = sadd.s32 %s152, 1
    %p156 = scmp.eq.s32.totalorder %s13, 1
    %p157 = scmp.ne.s32.totalorder %s152, %s154
    %p158 = scmp.eq.s32.totalorder %s13, 0
    %p159 = por %p157, %p158
    %p160 = scmp.ne.s32.totalorder %s152, %s154
    %p161 = scmp.eq.s32.totalorder %s18, 1
    %p162 = por %p160, %p161
    %p163 = scmp.ne.s32.totalorder %s154, %s155
    %p164 = scmp.eq.s32.totalorder %s18, 0
    %p165 = por %p163, %p164
    %p166 = scmp.ne.s32.totalorder %s154, %s155
    %p167 = scmp.eq.s32.totalorder %s19, 1
    %p168 = por %p166, %p167
    %p170 = scmp.ne.s32.totalorder %s155, %s169
    %p171 = scmp.eq.s32.totalorder %s19, 0
    %p172 = por %p170, %p171
    %s173 = ssub.s32 %s13, %s20
    %p174 = scmp.eq.s32.totalorder %s173, 0
    %s176 = sadd.s32 %s175, 1
    %s177 = scalar_select %p174, %s175, %s176
    %p180 = pneg %p174
    %p181 = scmp.eq.s32.totalorder %s13, 1
    %p182 = por %p180, %p181
    %p183 = scmp.ne.s32.totalorder %s175, %s178
    %p184 = scmp.eq.s32.totalorder %s13, 0
    %p185 = por %p183, %p184
    %p186 = scmp.ne.s32.totalorder %s175, %s178
    %p187 = scmp.eq.s32.totalorder %s18, 1
    %p188 = por %p186, %p187
    %p189 = scmp.ne.s32.totalorder %s178, %s179
    %p190 = scmp.eq.s32.totalorder %s18, 0
    %p191 = por %p189, %p190
    %p192 = scmp.ne.s32.totalorder %s178, %s179
    %p193 = scmp.eq.s32.totalorder %s19, 1
    %p194 = por %p192, %p193
    %p196 = scmp.ne.s32.totalorder %s179, %s195
    %p197 = scmp.eq.s32.totalorder %s19, 0
    %p198 = por %p196, %p197
    %p199 = scmp.le.s32.totalorder 1, %s13
    %p200 = scmp.lt.s32.totalorder %s13, 3
    %p201 = pnand %p199, %p200
    %p202 = pneg %p201
    // Predicated region
    $region9: #{cnn_small_forward.1} parent=5 // pred_check
      _
    $region10: #{cnn_small_forward.1} parent=5 // pred_check_branch
      %204 = sbr.rel (%p201) target = $region12
    $region11: #{cnn_small_forward.1} parent=5 // pred_region
      %s205 = ssub.s32 %s13, 1
      // Predicated region
      $region13: #{cnn_small_forward.1} parent=11 // pred_check
        %p206 = pneg %p60
      $region14: #{cnn_small_forward.1} parent=11 // pred_check_branch
        %208 = sbr.rel (%p206) target = $region16
      $region15: #{cnn_small_forward.1} parent=11 // pred_region
        _
      $region16: #{cnn_small_forward.1} parent=11 // pred_fallthru
        _
      // Predicated region
      $region17: #{cnn_small_forward.1} parent=11 // pred_check
        %p209 = pneg %p81
      $region18: #{cnn_small_forward.1} parent=11 // pred_check_branch
        %211 = sbr.rel (%p209) target = $region20
      $region19: #{cnn_small_forward.1} parent=11 // pred_region
        _
      $region20: #{cnn_small_forward.1} parent=11 // pred_fallthru
        _
      // Predicated region
      $region21: #{cnn_small_forward.1} parent=11 // pred_check
        %p212 = pneg %p102
      $region22: #{cnn_small_forward.1} parent=11 // pred_check_branch
        %214 = sbr.rel (%p212) target = $region24
      $region23: #{cnn_small_forward.1} parent=11 // pred_region
        _
      $region24: #{cnn_small_forward.1} parent=11 // pred_fallthru
        _
      // Predicated region
      $region25: #{cnn_small_forward.1} parent=11 // pred_check
        %p215 = pneg %p123
      $region26: #{cnn_small_forward.1} parent=11 // pred_check_branch
        %217 = sbr.rel (%p215) target = $region28
      $region27: #{cnn_small_forward.1} parent=11 // pred_region
        _
      $region28: #{cnn_small_forward.1} parent=11 // pred_fallthru
        _
      // Predicated region
      $region29: #{cnn_small_forward.1} parent=11 // pred_check
        %p218 = pneg %p144
      $region30: #{cnn_small_forward.1} parent=11 // pred_check_branch
        %220 = sbr.rel (%p218) target = $region32
      $region31: #{cnn_small_forward.1} parent=11 // pred_region
        _
      $region32: #{cnn_small_forward.1} parent=11 // pred_fallthru
        _
      // Predicated region
      $region33: #{cnn_small_forward.1} parent=11 // pred_check
        %p221 = pneg %p165
      $region34: #{cnn_small_forward.1} parent=11 // pred_check_branch
        %223 = sbr.rel (%p221) target = $region36
      $region35: #{cnn_small_forward.1} parent=11 // pred_region
        _
      $region36: #{cnn_small_forward.1} parent=11 // pred_fallthru
        _
    $region12: #{cnn_small_forward.1} parent=5 // pred_fallthru
      _
    %p224 = scmp.lt.s32.totalorder %s13, 2
    // Predicated region
    $region37: #{cnn_small_forward.1} parent=5 // pred_check
      %p225 = pneg %p224
    $region38: #{cnn_small_forward.1} parent=5 // pred_check_branch
      %227 = sbr.rel (%p225) target = $region40
    $region39: #{cnn_small_forward.1} parent=5 // pred_region
      // Predicated region
      $region41: #{cnn_small_forward.1} parent=39 // pred_check
        %p228 = pneg %p33
      $region42: #{cnn_small_forward.1} parent=39 // pred_check_branch
        %230 = sbr.rel (%p228) target = $region44
      $region43: #{cnn_small_forward.1} parent=39 // pred_region
        %s231 = smul.u32 8, %s13
        %p232 = scmp.lt.s32.totalorder %s231, 15
        %s233 = scalar_select %p232, %s231, 15
        %s234 = smul.addr %s233, 4
        %s235 = scalar_lea.vmem %s0, %s234
        %s236 = smul.u32 8, %s13
      $region44: #{cnn_small_forward.1} parent=39 // pred_fallthru
        _
    $region40: #{cnn_small_forward.1} parent=5 // pred_fallthru
      _
    %p237 = scmp.le.s32.totalorder 1, %s13
    %p238 = scmp.lt.s32.totalorder %s13, 3
    %p239 = pnand %p237, %p238
    %p240 = pneg %p239
    // Predicated region
    $region45: #{cnn_small_forward.1} parent=5 // pred_check
      _
    $region46: #{cnn_small_forward.1} parent=5 // pred_check_branch
      %242 = sbr.rel (%p239) target = $region48
    $region47: #{cnn_small_forward.1} parent=5 // pred_region
      %s243 = ssub.s32 %s13, 1
      %s244 = smul.u32 8, %s18
      %p245 = scmp.lt.s32.totalorder %s244, 15
      %s246 = scalar_select %p245, %s244, 15
      %s247 = smul.addr %s246, 4
      %s248 = scalar_lea.vmem %s0, %s247
      %p249 = pneg %p39
      %p250 = pneg %p36
      %p251 = pneg %p60
      %p252 = pneg %p57
      %p253 = pneg %p81
      %p254 = pneg %p78
      %p255 = pneg %p102
      %p256 = pneg %p99
      %p257 = pneg %p123
      %p258 = pneg %p120
      %p259 = pneg %p144
      %p260 = pneg %p141
      %p261 = pneg %p165
      %p262 = pneg %p162
      %p263 = pneg %p191
      %p264 = pneg %p188
      %p265 = scmp.lt.s32.totalorder %s18, 1
      %s266 = scalar_select %p265, %s18, 1
      %s267 = smul.addr %s266, 3
      %s268 = smul.addr %s267, 8
      %s269 = scalar_lea.vmem %s7, %s268
      %s270 = smul.u32 8, %s18
      %p271 = scmp.lt.s32.totalorder %s270, 15
      %s272 = scalar_select %p271, %s270, 15
      %s273 = smul.addr %s272, 4
      %s274 = scalar_lea.vmem %s0, %s273
      %s275 = smul.u32 8, %s18
      %p276 = scmp.lt.s32.totalorder %s18, 1
      %s277 = scalar_select %p276, %s18, 1
      %s278 = smul.addr %s277, 3
      %s279 = smul.addr %s278, 8
      %s280 = scalar_lea.vmem %s7, %s279
      %v282 = vld [vmem:[%s274] sm:$0xf]
      %v283 = vld [vmem:[%s274 + $0x4] sm:$0xf]
      %v284 = vld [vmem:[%s274 + $0x8] sm:$0xf]
      %v285 = vld [vmem:[%s274 + $0xc] sm:$0xf]
      %v286 = vld [vmem:[%s274 + $0x10] sm:$0xf]
      %v287 = vld [vmem:[%s274 + $0x14] sm:$0xf]
      %v288 = vld [vmem:[%s274 + $0x18] sm:$0xf]
      %vm289 = vcmask 125952
      %290 = vst.msk [vmem:[#allocation2] sm:$0xf] %vm289, %v282
      %291 = vst.msk [vmem:[#allocation2 + $0x4] sm:$0xf] %vm289, %v283
      %292 = vst.msk [vmem:[#allocation2 + $0x8] sm:$0xf] %vm289, %v284
      %293 = vst.msk [vmem:[#allocation2 + $0xc] sm:$0xf] %vm289, %v285
      %294 = vst.msk [vmem:[#allocation2 + $0x10] sm:$0xf] %vm289, %v286
      %295 = vst.msk [vmem:[#allocation2 + $0x14] sm:$0xf] %vm289, %v287
      %vm296 = vcmask 125952
      %vm297 = vsmask.f32 3328
      %vm298 = vmand %vm296, %vm297
      %v299 = vld [vmem:[#allocation2 + $0x18] sm:$0xf]
      %v300 = vsel %vm298, %v288, %v299
      %301 = vst [vmem:[#allocation2 + $0x18] sm:$0xf] %v300
      %v302 = vld [vmem:[%s274] sm:$0xf]
      %v303 = vld [vmem:[%s274 + $0x4] sm:$0xf]
      %v304 = vld [vmem:[%s274 + $0x8] sm:$0xf]
      %v305 = vld [vmem:[%s274 + $0xc] sm:$0xf]
      %v306 = vld [vmem:[%s274 + $0x10] sm:$0xf]
      %v307 = vld [vmem:[%s274 + $0x14] sm:$0xf]
      %v308 = vld [vmem:[%s274 + $0x18] sm:$0xf]
      %vm309 = vsmask.f32 7440
      %vm310 = vmor %vm297, %vm309
      %v312 = vshrl.u32 %v302, 16
      %v314 = vrot.slane %v312, 4
      %v315 = vshll.u32 %v302, 16
      %v317 = vrot.slane %v315, 5
      %v318 = vor.u32 %v314, %v317
      %v319 = vrot.slane %v318, 4
      %v321 = vshll.u32 %v303, 16
      %v323 = vrot.slane %v321, 5
      %v324 = vsel %vm310, %v319, %v323
      %v325 = vshrl.u32 %v303, 16
      %v327 = vrot.slane %v325, 4
      %v328 = vor.u32 %v327, %v323
      %v329 = vrot.slane %v328, 4
      %v331 = vshll.u32 %v304, 16
      %v333 = vrot.slane %v331, 5
      %v334 = vsel %vm310, %v329, %v333
      %v335 = vshrl.u32 %v304, 16
      %v337 = vrot.slane %v335, 4
      %v338 = vor.u32 %v337, %v333
      %v339 = vrot.slane %v338, 4
      %v341 = vshll.u32 %v305, 16
      %v343 = vrot.slane %v341, 5
      %v344 = vsel %vm310, %v339, %v343
      %v345 = vshrl.u32 %v305, 16
      %v347 = vrot.slane %v345, 4
      %v348 = vor.u32 %v347, %v343
      %v349 = vrot.slane %v348, 4
      %v351 = vshll.u32 %v306, 16
      %v353 = vrot.slane %v351, 5
      %v354 = vsel %vm310, %v349, %v353
      %v355 = vshrl.u32 %v306, 16
      %v357 = vrot.slane %v355, 4
      %v358 = vor.u32 %v357, %v353
      %v359 = vrot.slane %v358, 4
      %v361 = vshll.u32 %v307, 16
      %v363 = vrot.slane %v361, 5
      %v364 = vsel %vm310, %v359, %v363
      %v365 = vshrl.u32 %v307, 16
      %v367 = vrot.slane %v365, 4
      %v368 = vor.u32 %v367, %v363
      %v369 = vrot.slane %v368, 4
      %v371 = vshll.u32 %v308, 16
      %v373 = vrot.slane %v371, 5
      %v374 = vsel %vm310, %v369, %v373
      %v375 = vshrl.u32 %v308, 16
      %v377 = vrot.slane %v375, 4
      %v378 = vor.u32 %v377, %v373
      %v379 = vrot.slane %v378, 4
      %380 = vrot.lane.b32.xlu0 %v324, 16
      %v381 = vpop.permute.xlu0 %380
      %382 = vrot.lane.b32.xlu0 %v334, 16
      %v383 = vpop.permute.xlu0 %382
      %384 = vrot.lane.b32.xlu0 %v344, 16
      %v385 = vpop.permute.xlu0 %384
      %386 = vrot.lane.b32.xlu0 %v354, 16
      %v387 = vpop.permute.xlu0 %386
      %388 = vrot.lane.b32.xlu0 %v364, 16
      %v389 = vpop.permute.xlu0 %388
      %390 = vrot.lane.b32.xlu0 %v374, 16
      %v391 = vpop.permute.xlu0 %390
      %392 = vrot.lane.b32.xlu0 %v379, 16
      %v393 = vpop.permute.xlu0 %392
      %vm401 = vcmask 257152
      %402 = vst.msk [vmem:[#allocation2] sm:$0xf] %vm401, %v381
      %403 = vst.msk [vmem:[#allocation2 + $0x4] sm:$0xf] %vm401, %v383
      %404 = vst.msk [vmem:[#allocation2 + $0x8] sm:$0xf] %vm401, %v385
      %405 = vst.msk [vmem:[#allocation2 + $0xc] sm:$0xf] %vm401, %v387
      %406 = vst.msk [vmem:[#allocation2 + $0x10] sm:$0xf] %vm401, %v389
      %407 = vst.msk [vmem:[#allocation2 + $0x14] sm:$0xf] %vm401, %v391
      %vm408 = vcmask 257152
      %vm409 = vmand %vm408, %vm297
      %v410 = vld [vmem:[#allocation2 + $0x18] sm:$0xf]
      %v411 = vsel %vm409, %v393, %v410
      %412 = vst [vmem:[#allocation2 + $0x18] sm:$0xf] %v411
      %v413 = vld [vmem:[%s274 + $0x4] sm:$0xf]
      %v414 = vld [vmem:[%s274 + $0x8] sm:$0xf]
      %v415 = vld [vmem:[%s274 + $0xc] sm:$0xf]
      %v416 = vld [vmem:[%s274 + $0x10] sm:$0xf]
      %v417 = vld [vmem:[%s274 + $0x14] sm:$0xf]
      %v418 = vld [vmem:[%s274 + $0x18] sm:$0xf]
      %v419 = vld [vmem:[%s274 + $0x1c] sm:$0xf]
      %427 = vrot.lane.b32.xlu0 %v413, 32
      %v428 = vpop.permute.xlu0 %427
      %429 = vrot.lane.b32.xlu0 %v414, 32
      %v430 = vpop.permute.xlu0 %429
      %431 = vrot.lane.b32.xlu0 %v415, 32
      %v432 = vpop.permute.xlu0 %431
      %433 = vrot.lane.b32.xlu0 %v416, 32
      %v434 = vpop.permute.xlu0 %433
      %435 = vrot.lane.b32.xlu0 %v417, 32
      %v436 = vpop.permute.xlu0 %435
      %437 = vrot.lane.b32.xlu0 %v418, 32
      %v438 = vpop.permute.xlu0 %437
      %439 = vrot.lane.b32.xlu0 %v419, 32
      %v440 = vpop.permute.xlu0 %439
      %vm448 = vcmask 388352
      %449 = vst.msk [vmem:[#allocation2] sm:$0xf] %vm448, %v428
      %450 = vst.msk [vmem:[#allocation2 + $0x4] sm:$0xf] %vm448, %v430
      %451 = vst.msk [vmem:[#allocation2 + $0x8] sm:$0xf] %vm448, %v432
      %452 = vst.msk [vmem:[#allocation2 + $0xc] sm:$0xf] %vm448, %v434
      %453 = vst.msk [vmem:[#allocation2 + $0x10] sm:$0xf] %vm448, %v436
      %454 = vst.msk [vmem:[#allocation2 + $0x14] sm:$0xf] %vm448, %v438
      %vm455 = vcmask 388352
      %vm456 = vmand %vm455, %vm297
      %v457 = vld [vmem:[#allocation2 + $0x18] sm:$0xf]
      %v458 = vsel %vm456, %v440, %v457
      %459 = vst [vmem:[#allocation2 + $0x18] sm:$0xf] %v458
      %v460 = vld [vmem:[%s274 + $0x4] sm:$0xf]
      %v461 = vld [vmem:[%s274 + $0x8] sm:$0xf]
      %v462 = vld [vmem:[%s274 + $0xc] sm:$0xf]
      %v463 = vld [vmem:[%s274 + $0x10] sm:$0xf]
      %v464 = vld [vmem:[%s274 + $0x14] sm:$0xf]
      %v465 = vld [vmem:[%s274 + $0x18] sm:$0xf]
      %v466 = vld [vmem:[%s274 + $0x1c] sm:$0xf]
      %v468 = vshrl.u32 %v460, 16
      %v470 = vrot.slane %v468, 4
      %v471 = vshll.u32 %v460, 16
      %v473 = vrot.slane %v471, 5
      %v474 = vor.u32 %v470, %v473
      %v475 = vrot.slane %v474, 4
      %v477 = vshll.u32 %v461, 16
      %v479 = vrot.slane %v477, 5
      %v480 = vsel %vm310, %v475, %v479
      %v481 = vshrl.u32 %v461, 16
      %v483 = vrot.slane %v481, 4
      %v484 = vor.u32 %v483, %v479
      %v485 = vrot.slane %v484, 4
      %v487 = vshll.u32 %v462, 16
      %v489 = vrot.slane %v487, 5
      %v490 = vsel %vm310, %v485, %v489
      %v491 = vshrl.u32 %v462, 16
      %v493 = vrot.slane %v491, 4
      %v494 = vor.u32 %v493, %v489
      %v495 = vrot.slane %v494, 4
      %v497 = vshll.u32 %v463, 16
      %v499 = vrot.slane %v497, 5
      %v500 = vsel %vm310, %v495, %v499
      %v501 = vshrl.u32 %v463, 16
      %v503 = vrot.slane %v501, 4
      %v504 = vor.u32 %v503, %v499
      %v505 = vrot.slane %v504, 4
      %v507 = vshll.u32 %v464, 16
      %v509 = vrot.slane %v507, 5
      %v510 = vsel %vm310, %v505, %v509
      %v511 = vshrl.u32 %v464, 16
      %v513 = vrot.slane %v511, 4
      %v514 = vor.u32 %v513, %v509
      %v515 = vrot.slane %v514, 4
      %v517 = vshll.u32 %v465, 16
      %v519 = vrot.slane %v517, 5
      %v520 = vsel %vm310, %v515, %v519
      %v521 = vshrl.u32 %v465, 16
      %v523 = vrot.slane %v521, 4
      %v524 = vor.u32 %v523, %v519
      %v525 = vrot.slane %v524, 4
      %v527 = vshll.u32 %v466, 16
      %v529 = vrot.slane %v527, 5
      %v530 = vsel %vm310, %v525, %v529
      %v531 = vshrl.u32 %v466, 16
      %v533 = vrot.slane %v531, 4
      %v534 = vor.u32 %v533, %v529
      %v535 = vrot.slane %v534, 4
      %536 = vrot.lane.b32.xlu0 %v480, 48
      %v537 = vpop.permute.xlu0 %536
      %538 = vrot.lane.b32.xlu0 %v490, 48
      %v539 = vpop.permute.xlu0 %538
      %540 = vrot.lane.b32.xlu0 %v500, 48
      %v541 = vpop.permute.xlu0 %540
      %542 = vrot.lane.b32.xlu0 %v510, 48
      %v543 = vpop.permute.xlu0 %542
      %544 = vrot.lane.b32.xlu0 %v520, 48
      %v545 = vpop.permute.xlu0 %544
      %546 = vrot.lane.b32.xlu0 %v530, 48
      %v547 = vpop.permute.xlu0 %546
      %548 = vrot.lane.b32.xlu0 %v535, 48
      %v549 = vpop.permute.xlu0 %548
      %vm557 = vcmask 519552
      %558 = vst.msk [vmem:[#allocation2] sm:$0xf] %vm557, %v537
      %559 = vst.msk [vmem:[#allocation2 + $0x4] sm:$0xf] %vm557, %v539
      %560 = vst.msk [vmem:[#allocation2 + $0x8] sm:$0xf] %vm557, %v541
      %561 = vst.msk [vmem:[#allocation2 + $0xc] sm:$0xf] %vm557, %v543
      %562 = vst.msk [vmem:[#allocation2 + $0x10] sm:$0xf] %vm557, %v545
      %563 = vst.msk [vmem:[#allocation2 + $0x14] sm:$0xf] %vm557, %v547
      %vm564 = vcmask 519552
      %vm565 = vmand %vm564, %vm297
      %v566 = vld [vmem:[#allocation2 + $0x18] sm:$0xf]
      %v567 = vsel %vm565, %v549, %v566
      %568 = vst [vmem:[#allocation2 + $0x18] sm:$0xf] %v567
      %v569 = vld [vmem:[#allocation2] sm:$0xf]
      %v570 = vld [vmem:[#allocation2 + $0x4] sm:$0xf]
      %v571 = vld [vmem:[#allocation2 + $0x8] sm:$0xf]
      %v572 = vld [vmem:[#allocation2 + $0xc] sm:$0xf]
      %v573 = vld [vmem:[#allocation2 + $0x10] sm:$0xf]
      %v574 = vld [vmem:[#allocation2 + $0x14] sm:$0xf]
      %v575 = vld [vmem:[#allocation2 + $0x18] sm:$0xf]
      %v576 = vld [vmem:[%s1] sm:$0xf]
      %v577 = vld [vmem:[%s1 + $0x4] sm:$0xf]
      %v578 = vld [vmem:[%s1 + $0x8] sm:$0xf]
      %v579 = vld [vmem:[%s1 + $0xc] sm:$0xf]
      %v580 = vld [vmem:[%s1 + $0x10] sm:$0xf]
      %v581 = vld [vmem:[%s1 + $0x14] sm:$0xf]
      %v582 = vld [vmem:[%s1 + $0x18] sm:$0xf]
      %v583 = vld [vmem:[%s1 + $0x1c] sm:$0xf]
      %v584 = vld [vmem:[%s2] sm:$0x1]
      %v586 = vperm.slane %v584, 0
      %v595 = vunpack.c.l.b16 %v569
      %v596 = vunpack.c.l.b16 %v570
      %v597 = vunpack.c.l.b16 %v571
      %v598 = vunpack.c.l.b16 %v572
      %v599 = vunpack.c.l.b16 %v573
      %v600 = vunpack.c.l.b16 %v574
      %v601 = vunpack.c.l.b16 %v575
      %v602 = vpack.c.b16 %v596, %v595
      %v603 = vpack.c.b16 %v598, %v597
      %v604 = vpack.c.b16 %v600, %v599
      %v605 = vpack.c.b16 %v601, %v601
      %v614 = vunpack.c.l.b16 %v576
      %v615 = vunpack.c.l.b16 %v577
      %v616 = vunpack.c.l.b16 %v578
      %v617 = vunpack.c.l.b16 %v579
      %v618 = vunpack.c.l.b16 %v580
      %v619 = vunpack.c.l.b16 %v581
      %v620 = vunpack.c.l.b16 %v582
      %v621 = vunpack.c.l.b16 %v583
      %v622 = vpack.c.b16 %v615, %v614
      %v623 = vpack.c.b16 %v617, %v616
      %v624 = vpack.c.b16 %v619, %v618
      %v625 = vpack.c.b16 %v621, %v620
      %vm630 = vcmask 523264
      %v632 = vsel %vm630, %v602, 0
      %v635 = vsel %vm630, %v603, 0
      %v638 = vsel %vm630, %v604, 0
      %v641 = vsel %vm630, %v605, 0
      %643 = vmatpush.bf16.msra.mxu0 0
      %644 = vmatpush.bf16.msra.mxu0 0
      %645 = vmatpush.bf16.msra.mxu0 0
      %646 = vmatpush.bf16.msra.mxu0 0
      %647 = vmatpush.bf16.msra.mxu0 %v625
      %648 = vmatpush.bf16.msra.mxu0 %v624
      %649 = vmatpush.bf16.msra.mxu0 %v623
      %650 = vmatpush.bf16.msra.mxu0 %v622
      %651 = vmatmul.bf16.gmra.mxu0 %v632
      %v652 = vpop.f32.mrf.mxu0
      %v653 = vadd.f32 %v586, %v652
      %v654 = vpop.f32.mrf.mxu0
      %v655 = vadd.f32 %v586, %v654
      %656 = vmatmul.bf16.gmra.mxu0 %v635
      %v657 = vpop.f32.mrf.mxu0
      %v658 = vadd.f32 %v586, %v657
      %v659 = vpop.f32.mrf.mxu0
      %v660 = vadd.f32 %v586, %v659
      %661 = vmatmul.bf16.gmra.mxu0 %v638
      %v662 = vpop.f32.mrf.mxu0
      %v663 = vadd.f32 %v586, %v662
      %v664 = vpop.f32.mrf.mxu0
      %v665 = vadd.f32 %v586, %v664
      %666 = vmatmul.bf16.gmra.mxu0 %v641
      %v667 = vpop.f32.mrf.mxu0
      %v668 = vadd.f32 %v586, %v667
      %v669 = vpop.f32.mrf.mxu0
      %670 = vdwg.mxu0
      %v671 = vmax.f32 %v653, 0.0
      %v672 = vmax.f32 %v655, 0.0
      %v673 = vmax.f32 %v658, 0.0
      %v674 = vmax.f32 %v660, 0.0
      %v675 = vmax.f32 %v663, 0.0
      %v676 = vmax.f32 %v665, 0.0
      %v677 = vmax.f32 %v668, 0.0
      %v678 = vpack.c.bf16 %v671, %v671
      %v679 = vpack.c.bf16 %v672, %v672
      %v680 = vpack.c.bf16 %v673, %v673
      %v681 = vpack.c.bf16 %v674, %v674
      %v682 = vpack.c.bf16 %v675, %v675
      %v683 = vpack.c.bf16 %v676, %v676
      %v684 = vpack.c.bf16 %v677, %v677
      %vm685 = vcmask 257024
      %686 = vst.msk [vmem:[#allocation3] sm:$0xf] %vm685, %v678
      %687 = vst.msk [vmem:[#allocation3 + $0xc] sm:$0xf] %vm685, %v679
      %688 = vst.msk [vmem:[#allocation3 + $0x18] sm:$0xf] %vm685, %v680
      %689 = vst.msk [vmem:[#allocation3 + $0x24] sm:$0xf] %vm685, %v681
      %vm690 = vcmask 256000
      %vm691 = vsmask.f32 2304
      %vm692 = vmand %vm690, %vm691
      %v693 = vld [vmem:[#allocation3 + $0x30] sm:$0x7]
      %v694 = vsel %vm692, %v682, %v693
      %695 = vst [vmem:[#allocation3 + $0x30] sm:$0x7] %v694
      %v697 = vshrl.u32 %v678, 16
      %v699 = vrot.slane %v697, 4
      %v700 = vshll.u32 %v678, 16
      %v702 = vrot.slane %v700, 5
      %v703 = vor.u32 %v699, %v702
      %v704 = vrot.slane %v703, 4
      %v706 = vshll.u32 %v679, 16
      %v708 = vrot.slane %v706, 5
      %v709 = vsel %vm310, %v704, %v708
      %v710 = vshrl.u32 %v679, 16
      %v712 = vrot.slane %v710, 4
      %v713 = vor.u32 %v712, %v708
      %v714 = vrot.slane %v713, 4
      %v716 = vshll.u32 %v680, 16
      %v718 = vrot.slane %v716, 5
      %v719 = vsel %vm310, %v714, %v718
      %v720 = vshrl.u32 %v680, 16
      %v722 = vrot.slane %v720, 4
      %v723 = vor.u32 %v722, %v718
      %v724 = vrot.slane %v723, 4
      %v726 = vshll.u32 %v681, 16
      %v728 = vrot.slane %v726, 5
      %v729 = vsel %vm310, %v724, %v728
      %v730 = vshrl.u32 %v681, 16
      %v732 = vrot.slane %v730, 4
      %v733 = vor.u32 %v732, %v728
      %v734 = vrot.slane %v733, 4
      %v736 = vshll.u32 %v682, 16
      %v738 = vrot.slane %v736, 5
      %v739 = vsel %vm310, %v734, %v738
      %v740 = vshrl.u32 %v682, 16
      %v742 = vrot.slane %v740, 4
      %v743 = vor.u32 %v742, %v738
      %v744 = vrot.slane %v743, 4
      %745 = vrot.lane.b32.xlu0 %v709, 32
      %v746 = vpop.permute.xlu0 %745
      %747 = vrot.lane.b32.xlu0 %v719, 32
      %v748 = vpop.permute.xlu0 %747
      %749 = vrot.lane.b32.xlu0 %v729, 32
      %v750 = vpop.permute.xlu0 %749
      %751 = vrot.lane.b32.xlu0 %v739, 32
      %v752 = vpop.permute.xlu0 %751
      %753 = vrot.lane.b32.xlu0 %v744, 32
      %v754 = vpop.permute.xlu0 %753
      %vm760 = vcmask 519424
      %761 = vst.msk [vmem:[#allocation3] sm:$0xf] %vm760, %v746
      %762 = vst.msk [vmem:[#allocation3 + $0xc] sm:$0xf] %vm760, %v748
      %763 = vst.msk [vmem:[#allocation3 + $0x18] sm:$0xf] %vm760, %v750
      %764 = vst.msk [vmem:[#allocation3 + $0x24] sm:$0xf] %vm760, %v752
      %vm765 = vcmask 518400
      %vm766 = vmand %vm765, %vm691
      %v767 = vld [vmem:[#allocation3 + $0x30] sm:$0x7]
      %v768 = vsel %vm766, %v754, %v767
      %769 = vst [vmem:[#allocation3 + $0x30] sm:$0x7] %v768
      %vm775 = vcmask 1042432
      %vm776 = vcmask 1046532
      %vm777 = vmor %vm775, %vm776
      %v778 = vrot.slane %v678, 5
      %v779 = vrot.slane %v778, 4
      %v780 = vrot.slane %v679, 5
      %v781 = vsel %vm777, %v779, %v780
      %v782 = vrot.slane %v780, 4
      %v783 = vrot.slane %v680, 5
      %v784 = vsel %vm777, %v782, %v783
      %v785 = vrot.slane %v783, 4
      %v786 = vrot.slane %v681, 5
      %v787 = vsel %vm777, %v785, %v786
      %v788 = vrot.slane %v786, 4
      %v789 = vrot.slane %v682, 5
      %v790 = vsel %vm777, %v788, %v789
      %v791 = vrot.slane %v789, 4
      %792 = vrot.lane.b32.xlu0 %v781, 64
      %v793 = vpop.permute.xlu0 %792
      %794 = vrot.lane.b32.xlu0 %v784, 64
      %v795 = vpop.permute.xlu0 %794
      %796 = vrot.lane.b32.xlu0 %v787, 64
      %v797 = vpop.permute.xlu0 %796
      %798 = vrot.lane.b32.xlu0 %v790, 64
      %v799 = vpop.permute.xlu0 %798
      %800 = vrot.lane.b32.xlu0 %v791, 64
      %v801 = vpop.permute.xlu0 %800
      %vm807 = vcmask 781824
      %808 = vst.msk [vmem:[#allocation3] sm:$0xf] %vm807, %v793
      %809 = vst.msk [vmem:[#allocation3 + $0xc] sm:$0xf] %vm807, %v795
      %810 = vst.msk [vmem:[#allocation3 + $0x18] sm:$0xf] %vm807, %v797
      %811 = vst.msk [vmem:[#allocation3 + $0x24] sm:$0xf] %vm807, %v799
      %vm812 = vcmask 780800
      %vm813 = vmand %vm812, %vm691
      %v814 = vld [vmem:[#allocation3 + $0x30] sm:$0x7]
      %v815 = vsel %vm813, %v801, %v814
      %816 = vst [vmem:[#allocation3 + $0x30] sm:$0x7] %v815
      %818 = vrot.lane.b32.xlu0 %v679, 96
      %v819 = vpop.permute.xlu0 %818
      %820 = vrot.lane.b32.xlu0 %v680, 96
      %v821 = vpop.permute.xlu0 %820
      %822 = vrot.lane.b32.xlu0 %v681, 96
      %v823 = vpop.permute.xlu0 %822
      %824 = vrot.lane.b32.xlu0 %v682, 96
      %v825 = vpop.permute.xlu0 %824
      %826 = vrot.lane.b32.xlu0 %v683, 96
      %v827 = vpop.permute.xlu0 %826
      %vm833 = vcmask 1044224
      %834 = vst.msk [vmem:[#allocation3] sm:$0xf] %vm833, %v819
      %835 = vst.msk [vmem:[#allocation3 + $0xc] sm:$0xf] %vm833, %v821
      %836 = vst.msk [vmem:[#allocation3 + $0x18] sm:$0xf] %vm833, %v823
      %837 = vst.msk [vmem:[#allocation3 + $0x24] sm:$0xf] %vm833, %v825
      %vm838 = vcmask 1043200
      %vm839 = vmand %vm838, %vm691
      %v840 = vld [vmem:[#allocation3 + $0x30] sm:$0x7]
      %v841 = vsel %vm839, %v827, %v840
      %842 = vst [vmem:[#allocation3 + $0x30] sm:$0x7] %v841
      %v844 = vshll.u32 %v683, 16
      %v846 = vrot.slane %v844, 5
      %v847 = vsel %vm310, %v744, %v846
      %v848 = vshrl.u32 %v683, 16
      %v850 = vrot.slane %v848, 4
      %v851 = vor.u32 %v850, %v846
      %v852 = vrot.slane %v851, 4
      %858 = vst.msk [vmem:[#allocation3 + $0x4] sm:$0xf] %vm685, %v719
      %859 = vst.msk [vmem:[#allocation3 + $0x10] sm:$0xf] %vm685, %v729
      %860 = vst.msk [vmem:[#allocation3 + $0x1c] sm:$0xf] %vm685, %v739
      %861 = vst.msk [vmem:[#allocation3 + $0x28] sm:$0xf] %vm685, %v847
      %v862 = vld [vmem:[#allocation3 + $0x34] sm:$0x7]
      %v863 = vsel %vm692, %v852, %v862
      %864 = vst [vmem:[#allocation3 + $0x34] sm:$0x7] %v863
      %v865 = vrot.slane %v683, 5
      %v866 = vsel %vm777, %v791, %v865
      %v867 = vrot.slane %v865, 4
      %868 = vrot.lane.b32.xlu0 %v784, 32
      %v869 = vpop.permute.xlu0 %868
      %870 = vrot.lane.b32.xlu0 %v787, 32
      %v871 = vpop.permute.xlu0 %870
      %872 = vrot.lane.b32.xlu0 %v790, 32
      %v873 = vpop.permute.xlu0 %872
      %874 = vrot.lane.b32.xlu0 %v866, 32
      %v875 = vpop.permute.xlu0 %874
      %876 = vrot.lane.b32.xlu0 %v867, 32
      %v877 = vpop.permute.xlu0 %876
      %883 = vst.msk [vmem:[#allocation3 + $0x4] sm:$0xf] %vm760, %v869
      %884 = vst.msk [vmem:[#allocation3 + $0x10] sm:$0xf] %vm760, %v871
      %885 = vst.msk [vmem:[#allocation3 + $0x1c] sm:$0xf] %vm760, %v873
      %886 = vst.msk [vmem:[#allocation3 + $0x28] sm:$0xf] %vm760, %v875
      %v887 = vld [vmem:[#allocation3 + $0x34] sm:$0x7]
      %v888 = vsel %vm766, %v877, %v887
      %889 = vst [vmem:[#allocation3 + $0x34] sm:$0x7] %v888
      %891 = vrot.lane.b32.xlu0 %v680, 64
      %v892 = vpop.permute.xlu0 %891
      %893 = vrot.lane.b32.xlu0 %v681, 64
      %v894 = vpop.permute.xlu0 %893
      %895 = vrot.lane.b32.xlu0 %v682, 64
      %v896 = vpop.permute.xlu0 %895
      %897 = vrot.lane.b32.xlu0 %v683, 64
      %v898 = vpop.permute.xlu0 %897
      %899 = vrot.lane.b32.xlu0 %v684, 64
      %v900 = vpop.permute.xlu0 %899
      %906 = vst.msk [vmem:[#allocation3 + $0x4] sm:$0xf] %vm807, %v892
      %907 = vst.msk [vmem:[#allocation3 + $0x10] sm:$0xf] %vm807, %v894
      %908 = vst.msk [vmem:[#allocation3 + $0x1c] sm:$0xf] %vm807, %v896
      %909 = vst.msk [vmem:[#allocation3 + $0x28] sm:$0xf] %vm807, %v898
      %v910 = vld [vmem:[#allocation3 + $0x34] sm:$0x7]
      %v911 = vsel %vm813, %v900, %v910
      %912 = vst [vmem:[#allocation3 + $0x34] sm:$0x7] %v911
      %v914 = vshll.u32 %v684, 16
      %v916 = vrot.slane %v914, 5
      %v917 = vsel %vm310, %v852, %v916
      %v918 = vshrl.u32 %v684, 16
      %v920 = vrot.slane %v918, 4
      %v921 = vor.u32 %v920, %v916
      %v922 = vrot.slane %v921, 4
      %923 = vrot.lane.b32.xlu0 %v729, 96
      %v924 = vpop.permute.xlu0 %923
      %925 = vrot.lane.b32.xlu0 %v739, 96
      %v926 = vpop.permute.xlu0 %925
      %927 = vrot.lane.b32.xlu0 %v847, 96
      %v928 = vpop.permute.xlu0 %927
      %929 = vrot.lane.b32.xlu0 %v917, 96
      %v930 = vpop.permute.xlu0 %929
      %931 = vrot.lane.b32.xlu0 %v922, 96
      %v932 = vpop.permute.xlu0 %931
      %938 = vst.msk [vmem:[#allocation3 + $0x4] sm:$0xf] %vm833, %v924
      %939 = vst.msk [vmem:[#allocation3 + $0x10] sm:$0xf] %vm833, %v926
      %940 = vst.msk [vmem:[#allocation3 + $0x1c] sm:$0xf] %vm833, %v928
      %941 = vst.msk [vmem:[#allocation3 + $0x28] sm:$0xf] %vm833, %v930
      %v942 = vld [vmem:[#allocation3 + $0x34] sm:$0x7]
      %v943 = vsel %vm839, %v932, %v942
      %944 = vst [vmem:[#allocation3 + $0x34] sm:$0x7] %v943
      %v945 = vrot.slane %v684, 5
      %v946 = vsel %vm777, %v867, %v945
      %v947 = vrot.slane %v945, 4
      %953 = vst.msk [vmem:[#allocation3 + $0x8] sm:$0xf] %vm685, %v787
      %954 = vst.msk [vmem:[#allocation3 + $0x14] sm:$0xf] %vm685, %v790
      %955 = vst.msk [vmem:[#allocation3 + $0x20] sm:$0xf] %vm685, %v866
      %956 = vst.msk [vmem:[#allocation3 + $0x2c] sm:$0xf] %vm685, %v946
      %v957 = vld [vmem:[#allocation3 + $0x38] sm:$0x7]
      %v958 = vsel %vm692, %v947, %v957
      %959 = vst [vmem:[#allocation3 + $0x38] sm:$0x7] %v958
      %v960 = vld [vmem:[#allocation3] sm:$0xff]
      %v961 = vld [vmem:[#allocation3 + $0x8] sm:$0xf]
      %v962 = vld [vmem:[#allocation3 + $0xc] sm:$0xff]
      %v963 = vld [vmem:[#allocation3 + $0x14] sm:$0xf]
      %v964 = vld [vmem:[#allocation3 + $0x18] sm:$0xff]
      %v965 = vld [vmem:[#allocation3 + $0x20] sm:$0xf]
      %v966 = vld [vmem:[#allocation3 + $0x24] sm:$0xff]
      %v967 = vld [vmem:[#allocation3 + $0x2c] sm:$0xf]
      %v968 = vld [vmem:[#allocation3 + $0x30] sm:$0x77]
      %v969 = vld [vmem:[#allocation3 + $0x38] sm:$0x7]
      %v970 = vld [vmem:[%s3] sm:$0xf]
      %v971 = vld [vmem:[%s3 + $0x4] sm:$0xf]
      %v972 = vld [vmem:[%s3 + $0x8] sm:$0xf]
      %v973 = vld [vmem:[%s3 + $0xc] sm:$0xf]
      %v974 = vld [vmem:[%s3 + $0x10] sm:$0xf]
      %v975 = vld [vmem:[%s3 + $0x14] sm:$0xf]
      %v976 = vld [vmem:[%s3 + $0x18] sm:$0xf]
      %v977 = vld [vmem:[%s3 + $0x1c] sm:$0xf]
      %v978 = vld [vmem:[%s3 + $0x20] sm:$0xf]
      %v979 = vld [vmem:[%s3 + $0x24] sm:$0xf]
      %v980 = vld [vmem:[%s3 + $0x28] sm:$0xf]
      %v981 = vld [vmem:[%s3 + $0x2c] sm:$0xf]
      %v982 = vld [vmem:[%s3 + $0x30] sm:$0xf]
      %v983 = vld [vmem:[%s3 + $0x34] sm:$0xf]
      %v984 = vld [vmem:[%s3 + $0x38] sm:$0xf]
      %v985 = vld [vmem:[%s3 + $0x3c] sm:$0xf]
      %v986 = vld [vmem:[%s3 + $0x40] sm:$0xf]
      %v987 = vld [vmem:[%s3 + $0x44] sm:$0xf]
      %v988 = vld [vmem:[%s3 + $0x48] sm:$0xf]
      %v989 = vld [vmem:[%s3 + $0x4c] sm:$0xf]
      %v990 = vld [vmem:[%s3 + $0x50] sm:$0xf]
      %v991 = vld [vmem:[%s3 + $0x54] sm:$0xf]
      %v992 = vld [vmem:[%s3 + $0x58] sm:$0xf]
      %v993 = vld [vmem:[%s3 + $0x5c] sm:$0xf]
      %v994 = vld [vmem:[%s3 + $0x60] sm:$0xf]
      %v995 = vld [vmem:[%s3 + $0x64] sm:$0xf]
      %v996 = vld [vmem:[%s3 + $0x68] sm:$0xf]
      %v997 = vld [vmem:[%s3 + $0x6c] sm:$0xf]
      %v998 = vld [vmem:[%s3 + $0x70] sm:$0xf]
      %v999 = vld [vmem:[%s3 + $0x74] sm:$0xf]
      %v1000 = vld [vmem:[%s3 + $0x78] sm:$0xf]
      %v1001 = vld [vmem:[%s3 + $0x7c] sm:$0xf]
      %v1002 = vld [vmem:[%s3 + $0x80] sm:$0xf]
      %v1003 = vld [vmem:[%s3 + $0x84] sm:$0xf]
      %v1004 = vld [vmem:[%s3 + $0x88] sm:$0xf]
      %v1005 = vld [vmem:[%s3 + $0x8c] sm:$0xf]
      %v1006 = vld [vmem:[%s4] sm:$0x1]
      %v1008 = vperm.slane %v1006, 0
      %v1020 = vunpack.c.l.b16 %v960
      %v1021 = vunpack.c.h.b16 %v960
      %v1022 = vunpack.c.l.b16 %v961
      %v1023 = vunpack.c.l.b16 %v962
      %v1024 = vunpack.c.h.b16 %v962
      %v1025 = vunpack.c.l.b16 %v963
      %v1026 = vunpack.c.l.b16 %v964
      %v1027 = vunpack.c.h.b16 %v964
      %v1028 = vunpack.c.l.b16 %v965
      %v1029 = vunpack.c.l.b16 %v966
      %v1030 = vunpack.c.h.b16 %v966
      %v1031 = vunpack.c.l.b16 %v967
      %v1032 = vunpack.c.l.b16 %v968
      %v1033 = vunpack.c.h.b16 %v968
      %v1034 = vunpack.c.l.b16 %v969
      %v1035 = vpack.c.b16 %v1023, %v1020
      %v1036 = vpack.c.b16 %v1024, %v1021
      %v1037 = vpack.c.b16 %v1025, %v1022
      %v1038 = vpack.c.b16 %v1029, %v1026
      %v1039 = vpack.c.b16 %v1030, %v1027
      %v1040 = vpack.c.b16 %v1031, %v1028
      %v1041 = vpack.c.b16 %v1032, %v1032
      %v1042 = vpack.c.b16 %v1033, %v1033
      %v1043 = vpack.c.b16 %v1034, %v1034
      %v1086 = vunpack.c.l.b16 %v970
      %v1087 = vunpack.c.l.b16 %v971
      %v1088 = vunpack.c.l.b16 %v972
      %v1089 = vunpack.c.l.b16 %v973
      %v1090 = vunpack.c.l.b16 %v974
      %v1091 = vunpack.c.l.b16 %v975
      %v1092 = vunpack.c.l.b16 %v976
      %v1093 = vunpack.c.l.b16 %v977
      %v1094 = vunpack.c.l.b16 %v978
      %v1095 = vunpack.c.l.b16 %v979
      %v1096 = vunpack.c.l.b16 %v980
      %v1097 = vunpack.c.l.b16 %v981
      %v1098 = vunpack.c.l.b16 %v982
      %v1099 = vunpack.c.l.b16 %v983
      %v1100 = vunpack.c.l.b16 %v984
      %v1101 = vunpack.c.l.b16 %v985
      %v1102 = vunpack.c.l.b16 %v986
      %v1103 = vunpack.c.l.b16 %v987
      %v1104 = vunpack.c.l.b16 %v988
      %v1105 = vunpack.c.l.b16 %v989
      %v1106 = vunpack.c.l.b16 %v990
      %v1107 = vunpack.c.l.b16 %v991
      %v1108 = vunpack.c.l.b16 %v992
      %v1109 = vunpack.c.l.b16 %v993
      %v1110 = vunpack.c.l.b16 %v994
      %v1111 = vunpack.c.l.b16 %v995
      %v1112 = vunpack.c.l.b16 %v996
      %v1113 = vunpack.c.l.b16 %v997
      %v1114 = vunpack.c.l.b16 %v998
      %v1115 = vunpack.c.l.b16 %v999
      %v1116 = vunpack.c.l.b16 %v1000
      %v1117 = vunpack.c.l.b16 %v1001
      %v1118 = vunpack.c.l.b16 %v1002
      %v1119 = vunpack.c.l.b16 %v1003
      %v1120 = vunpack.c.l.b16 %v1004
      %v1121 = vunpack.c.l.b16 %v1005
      %v1122 = vpack.c.b16 %v1087, %v1086
      %v1123 = vpack.c.b16 %v1089, %v1088
      %v1124 = vpack.c.b16 %v1091, %v1090
      %v1125 = vpack.c.b16 %v1093, %v1092
      %v1126 = vpack.c.b16 %v1095, %v1094
      %v1127 = vpack.c.b16 %v1097, %v1096
      %v1128 = vpack.c.b16 %v1099, %v1098
      %v1129 = vpack.c.b16 %v1101, %v1100
      %v1130 = vpack.c.b16 %v1103, %v1102
      %v1131 = vpack.c.b16 %v1105, %v1104
      %v1132 = vpack.c.b16 %v1107, %v1106
      %v1133 = vpack.c.b16 %v1109, %v1108
      %v1134 = vpack.c.b16 %v1111, %v1110
      %v1135 = vpack.c.b16 %v1113, %v1112
      %v1136 = vpack.c.b16 %v1115, %v1114
      %v1137 = vpack.c.b16 %v1117, %v1116
      %v1138 = vpack.c.b16 %v1119, %v1118
      %v1139 = vpack.c.b16 %v1121, %v1120
      %vm1158 = vcmask 261120
      %v1160 = vsel %vm1158, %v1037, 0
      %v1163 = vsel %vm1158, %v1040, 0
      %v1166 = vsel %vm1158, %v1043, 0
      %1168 = vmatpush.bf16.msra.mxu0 %v1129
      %1169 = vmatpush.bf16.msra.mxu0 %v1128
      %1170 = vmatpush.bf16.msra.mxu0 %v1127
      %1171 = vmatpush.bf16.msra.mxu0 %v1126
      %1172 = vmatpush.bf16.msra.mxu0 %v1125
      %1173 = vmatpush.bf16.msra.mxu0 %v1124
      %1174 = vmatpush.bf16.msra.mxu0 %v1123
      %1175 = vmatpush.bf16.msra.mxu0 %v1122
      %1176 = vmatmul.bf16.gmra.mxu0 %v1035
      %v1177 = vpop.f32.mrf.mxu0
      %v1178 = vadd.f32 %v1008, %v1177
      %v1179 = vpop.f32.mrf.mxu0
      %v1180 = vadd.f32 %v1008, %v1179
      %1181 = vmatmul.bf16.gmra.mxu0 %v1038
      %v1182 = vpop.f32.mrf.mxu0
      %v1183 = vadd.f32 %v1008, %v1182
      %v1184 = vpop.f32.mrf.mxu0
      %v1185 = vadd.f32 %v1008, %v1184
      %1186 = vmatmul.bf16.gmra.mxu0 %v1041
      %v1187 = vpop.f32.mrf.mxu0
      %v1188 = vadd.f32 %v1008, %v1187
      %v1189 = vpop.f32.mrf.mxu0
      %1190 = vdwg.mxu0
      %1191 = vmatpush.bf16.msra.mxu0 %v1137
      %1192 = vmatpush.bf16.msra.mxu0 %v1136
      %1193 = vmatpush.bf16.msra.mxu0 %v1135
      %1194 = vmatpush.bf16.msra.mxu0 %v1134
      %1195 = vmatpush.bf16.msra.mxu0 %v1133
      %1196 = vmatpush.bf16.msra.mxu0 %v1132
      %1197 = vmatpush.bf16.msra.mxu0 %v1131
      %1198 = vmatpush.bf16.msra.mxu0 %v1130
      %1199 = vmatmul.bf16.gmra.mxu0 %v1036
      %v1200 = vpop.f32.mrf.mxu0
      %v1201 = vadd.f32 %v1178, %v1200
      %v1202 = vpop.f32.mrf.mxu0
      %v1203 = vadd.f32 %v1180, %v1202
      %1204 = vmatmul.bf16.gmra.mxu0 %v1039
      %v1205 = vpop.f32.mrf.mxu0
      %v1206 = vadd.f32 %v1183, %v1205
      %v1207 = vpop.f32.mrf.mxu0
      %v1208 = vadd.f32 %v1185, %v1207
      %1209 = vmatmul.bf16.gmra.mxu0 %v1042
      %v1210 = vpop.f32.mrf.mxu0
      %v1211 = vadd.f32 %v1188, %v1210
      %v1212 = vpop.f32.mrf.mxu0
      %1213 = vdwg.mxu0
      %1214 = vmatpush.bf16.msra.mxu0 0
      %1215 = vmatpush.bf16.msra.mxu0 0
      %1216 = vmatpush.bf16.msra.mxu0 0
      %1217 = vmatpush.bf16.msra.mxu0 0
      %1218 = vmatpush.bf16.msra.mxu0 0
      %1219 = vmatpush.bf16.msra.mxu0 0
      %1220 = vmatpush.bf16.msra.mxu0 %v1139
      %1221 = vmatpush.bf16.msra.mxu0 %v1138
      %1222 = vmatmul.bf16.gmra.mxu0 %v1160
      %v1223 = vpop.f32.mrf.mxu0
      %v1224 = vadd.f32 %v1201, %v1223
      %v1225 = vpop.f32.mrf.mxu0
      %v1226 = vadd.f32 %v1203, %v1225
      %1227 = vmatmul.bf16.gmra.mxu0 %v1163
      %v1228 = vpop.f32.mrf.mxu0
      %v1229 = vadd.f32 %v1206, %v1228
      %v1230 = vpop.f32.mrf.mxu0
      %v1231 = vadd.f32 %v1208, %v1230
      %1232 = vmatmul.bf16.gmra.mxu0 %v1166
      %v1233 = vpop.f32.mrf.mxu0
      %v1234 = vadd.f32 %v1211, %v1233
      %v1235 = vpop.f32.mrf.mxu0
      %1236 = vdwg.mxu0
      %v1237 = vmax.f32 %v1224, 0.0
      %v1238 = vmax.f32 %v1226, 0.0
      %v1239 = vmax.f32 %v1229, 0.0
      %v1240 = vmax.f32 %v1231, 0.0
      %v1241 = vmax.f32 %v1234, 0.0
      %v1242 = vpack.c.bf16 %v1237, %v1237
      %v1243 = vpack.c.bf16 %v1238, %v1238
      %v1244 = vpack.c.bf16 %v1239, %v1239
      %v1245 = vpack.c.bf16 %v1240, %v1240
      %v1246 = vpack.c.bf16 %v1241, %v1241
      %vm1247 = vcmask 519168
      %1248 = vst.msk [vmem:[#allocation4] sm:$0xf] %vm1247, %v1242
      %1249 = vst.msk [vmem:[#allocation4 + $0x14] sm:$0xf] %vm1247, %v1243
      %vm1250 = vcmask 517120
      %vm1251 = vsmask.f32 1280
      %vm1252 = vmand %vm1250, %vm1251
      %v1253 = vld [vmem:[#allocation4 + $0x28] sm:$0x3]
      %v1254 = vsel %vm1252, %v1244, %v1253
      %1255 = vst [vmem:[#allocation4 + $0x28] sm:$0x3] %v1254
      %v1257 = vshrl.u32 %v1242, 16
      %v1259 = vrot.slane %v1257, 4
      %v1260 = vshll.u32 %v1242, 16
      %v1262 = vrot.slane %v1260, 5
      %v1263 = vor.u32 %v1259, %v1262
      %v1264 = vrot.slane %v1263, 4
      %v1266 = vshll.u32 %v1243, 16
      %v1268 = vrot.slane %v1266, 5
      %v1269 = vsel %vm310, %v1264, %v1268
      %v1270 = vshrl.u32 %v1243, 16
      %v1272 = vrot.slane %v1270, 4
      %v1273 = vor.u32 %v1272, %v1268
      %v1274 = vrot.slane %v1273, 4
      %v1276 = vshll.u32 %v1244, 16
      %v1278 = vrot.slane %v1276, 5
      %v1279 = vsel %vm310, %v1274, %v1278
      %v1280 = vshrl.u32 %v1244, 16
      %v1282 = vrot.slane %v1280, 4
      %v1283 = vor.u32 %v1282, %v1278
      %v1284 = vrot.slane %v1283, 4
      %1285 = vrot.lane.b32.xlu0 %v1269, 64
      %v1286 = vpop.permute.xlu0 %1285
      %1287 = vrot.lane.b32.xlu0 %v1279, 64
      %v1288 = vpop.permute.xlu0 %1287
      %1289 = vrot.lane.b32.xlu0 %v1284, 64
      %v1290 = vpop.permute.xlu0 %1289
      %vm1294 = vcmask 1043968
      %1295 = vst.msk [vmem:[#allocation4] sm:$0xf] %vm1294, %v1286
      %1296 = vst.msk [vmem:[#allocation4 + $0x14] sm:$0xf] %vm1294, %v1288
      %vm1297 = vcmask 1041920
      %vm1298 = vmand %vm1297, %vm1251
      %v1299 = vld [vmem:[#allocation4 + $0x28] sm:$0x3]
      %v1300 = vsel %vm1298, %v1290, %v1299
      %1301 = vst [vmem:[#allocation4 + $0x28] sm:$0x3] %v1300
      %v1305 = vrot.slane %v1242, 5
      %v1306 = vrot.slane %v1305, 4
      %v1307 = vrot.slane %v1243, 5
      %v1308 = vsel %vm777, %v1306, %v1307
      %v1309 = vrot.slane %v1307, 4
      %v1310 = vrot.slane %v1244, 5
      %v1311 = vsel %vm777, %v1309, %v1310
      %v1312 = vrot.slane %v1310, 4
      %1316 = vst.msk [vmem:[#allocation4 + $0x4] sm:$0xf] %vm1247, %v1308
      %1317 = vst.msk [vmem:[#allocation4 + $0x18] sm:$0xf] %vm1247, %v1311
      %v1318 = vld [vmem:[#allocation4 + $0x2c] sm:$0x3]
      %v1319 = vsel %vm1252, %v1312, %v1318
      %1320 = vst [vmem:[#allocation4 + $0x2c] sm:$0x3] %v1319
      %1322 = vrot.lane.b32.xlu0 %v1243, 64
      %v1323 = vpop.permute.xlu0 %1322
      %1324 = vrot.lane.b32.xlu0 %v1244, 64
      %v1325 = vpop.permute.xlu0 %1324
      %1326 = vrot.lane.b32.xlu0 %v1245, 64
      %v1327 = vpop.permute.xlu0 %1326
      %1331 = vst.msk [vmem:[#allocation4 + $0x4] sm:$0xf] %vm1294, %v1323
      %1332 = vst.msk [vmem:[#allocation4 + $0x18] sm:$0xf] %vm1294, %v1325
      %v1333 = vld [vmem:[#allocation4 + $0x2c] sm:$0x3]
      %v1334 = vsel %vm1298, %v1327, %v1333
      %1335 = vst [vmem:[#allocation4 + $0x2c] sm:$0x3] %v1334
      %v1337 = vshll.u32 %v1245, 16
      %v1339 = vrot.slane %v1337, 5
      %v1340 = vsel %vm310, %v1284, %v1339
      %v1341 = vshrl.u32 %v1245, 16
      %v1343 = vrot.slane %v1341, 4
      %v1344 = vor.u32 %v1343, %v1339
      %v1345 = vrot.slane %v1344, 4
      %1349 = vst.msk [vmem:[#allocation4 + $0x8] sm:$0xf] %vm1247, %v1279
      %1350 = vst.msk [vmem:[#allocation4 + $0x1c] sm:$0xf] %vm1247, %v1340
      %v1351 = vld [vmem:[#allocation4 + $0x30] sm:$0x3]
      %v1352 = vsel %vm1252, %v1345, %v1351
      %1353 = vst [vmem:[#allocation4 + $0x30] sm:$0x3] %v1352
      %v1354 = vrot.slane %v1245, 5
      %v1355 = vsel %vm777, %v1312, %v1354
      %v1356 = vrot.slane %v1354, 4
      %1357 = vrot.lane.b32.xlu0 %v1311, 64
      %v1358 = vpop.permute.xlu0 %1357
      %1359 = vrot.lane.b32.xlu0 %v1355, 64
      %v1360 = vpop.permute.xlu0 %1359
      %1361 = vrot.lane.b32.xlu0 %v1356, 64
      %v1362 = vpop.permute.xlu0 %1361
      %1366 = vst.msk [vmem:[#allocation4 + $0x8] sm:$0xf] %vm1294, %v1358
      %1367 = vst.msk [vmem:[#allocation4 + $0x1c] sm:$0xf] %vm1294, %v1360
      %v1368 = vld [vmem:[#allocation4 + $0x30] sm:$0x3]
      %v1369 = vsel %vm1298, %v1362, %v1368
      %1370 = vst [vmem:[#allocation4 + $0x30] sm:$0x3] %v1369
      %1371 = vst.msk [vmem:[#allocation4 + $0xc] sm:$0xf] %vm1247, %v1244
      %1372 = vst.msk [vmem:[#allocation4 + $0x20] sm:$0xf] %vm1247, %v1245
      %v1373 = vld [vmem:[#allocation4 + $0x34] sm:$0x3]
      %v1374 = vsel %vm1252, %v1246, %v1373
      %1375 = vst [vmem:[#allocation4 + $0x34] sm:$0x3] %v1374
      %v1377 = vshll.u32 %v1246, 16
      %v1379 = vrot.slane %v1377, 5
      %v1380 = vsel %vm310, %v1345, %v1379
      %v1381 = vshrl.u32 %v1246, 16
      %v1383 = vrot.slane %v1381, 4
      %v1384 = vor.u32 %v1383, %v1379
      %v1385 = vrot.slane %v1384, 4
      %1386 = vrot.lane.b32.xlu0 %v1340, 64
      %v1387 = vpop.permute.xlu0 %1386
      %1388 = vrot.lane.b32.xlu0 %v1380, 64
      %v1389 = vpop.permute.xlu0 %1388
      %1390 = vrot.lane.b32.xlu0 %v1385, 64
      %v1391 = vpop.permute.xlu0 %1390
      %1395 = vst.msk [vmem:[#allocation4 + $0xc] sm:$0xf] %vm1294, %v1387
      %1396 = vst.msk [vmem:[#allocation4 + $0x20] sm:$0xf] %vm1294, %v1389
      %v1397 = vld [vmem:[#allocation4 + $0x34] sm:$0x3]
      %v1398 = vsel %vm1298, %v1391, %v1397
      %1399 = vst [vmem:[#allocation4 + $0x34] sm:$0x3] %v1398
      %v1401 = vrot.slane %v1246, 5
      %v1402 = vsel %vm777, %v1356, %v1401
      %v1403 = vrot.slane %v1401, 4
      %1407 = vst.msk [vmem:[#allocation4 + $0x10] sm:$0xf] %vm1247, %v1355
      %1408 = vst.msk [vmem:[#allocation4 + $0x24] sm:$0xf] %vm1247, %v1402
      %v1409 = vld [vmem:[#allocation4 + $0x38] sm:$0x3]
      %v1410 = vsel %vm1252, %v1403, %v1409
      %1411 = vst [vmem:[#allocation4 + $0x38] sm:$0x3] %v1410
      %v1412 = vld [vmem:[#allocation4] sm:$0xff]
      %v1413 = vld [vmem:[#allocation4 + $0x8] sm:$0xff]
      %v1414 = vld [vmem:[#allocation4 + $0x10] sm:$0xf]
      %v1415 = vld [vmem:[#allocation4 + $0x14] sm:$0xff]
      %v1416 = vld [vmem:[#allocation4 + $0x1c] sm:$0xff]
      %v1417 = vld [vmem:[#allocation4 + $0x24] sm:$0xf]
      %v1418 = vld [vmem:[#allocation4 + $0x28] sm:$0x33]
      %v1419 = vld [vmem:[#allocation4 + $0x30] sm:$0x33]
      %v1420 = vld [vmem:[#allocation4 + $0x38] sm:$0x3]
      %v1421 = vld [vmem:[%s5] sm:$0xf]
      %v1422 = vld [vmem:[%s5 + $0x4] sm:$0xf]
      %v1423 = vld [vmem:[%s5 + $0x8] sm:$0xf]
      %v1424 = vld [vmem:[%s5 + $0xc] sm:$0xf]
      %v1425 = vld [vmem:[%s5 + $0x10] sm:$0xf]
      %v1426 = vld [vmem:[%s5 + $0x14] sm:$0xf]
      %v1427 = vld [vmem:[%s5 + $0x18] sm:$0xf]
      %v1428 = vld [vmem:[%s5 + $0x1c] sm:$0xf]
      %v1429 = vld [vmem:[%s5 + $0x20] sm:$0xf]
      %v1430 = vld [vmem:[%s5 + $0x24] sm:$0xf]
      %v1431 = vld [vmem:[%s5 + $0x28] sm:$0xf]
      %v1432 = vld [vmem:[%s5 + $0x2c] sm:$0xf]
      %v1433 = vld [vmem:[%s5 + $0x30] sm:$0xf]
      %v1434 = vld [vmem:[%s5 + $0x34] sm:$0xf]
      %v1435 = vld [vmem:[%s5 + $0x38] sm:$0xf]
      %v1436 = vld [vmem:[%s5 + $0x3c] sm:$0xf]
      %v1437 = vld [vmem:[%s5 + $0x40] sm:$0xf]
      %v1438 = vld [vmem:[%s5 + $0x44] sm:$0xf]
      %v1439 = vld [vmem:[%s5 + $0x48] sm:$0xf]
      %v1440 = vld [vmem:[%s5 + $0x4c] sm:$0xf]
      %v1441 = vld [vmem:[%s5 + $0x50] sm:$0xf]
      %v1442 = vld [vmem:[%s5 + $0x54] sm:$0xf]
      %v1443 = vld [vmem:[%s5 + $0x58] sm:$0xf]
      %v1444 = vld [vmem:[%s5 + $0x5c] sm:$0xf]
      %v1445 = vld [vmem:[%s5 + $0x60] sm:$0xf]
      %v1446 = vld [vmem:[%s5 + $0x64] sm:$0xf]
      %v1447 = vld [vmem:[%s5 + $0x68] sm:$0xf]
      %v1448 = vld [vmem:[%s5 + $0x6c] sm:$0xf]
      %v1449 = vld [vmem:[%s5 + $0x70] sm:$0xf]
      %v1450 = vld [vmem:[%s5 + $0x74] sm:$0xf]
      %v1451 = vld [vmem:[%s5 + $0x78] sm:$0xf]
      %v1452 = vld [vmem:[%s5 + $0x7c] sm:$0xf]
      %v1453 = vld [vmem:[%s5 + $0x80] sm:$0xf]
      %v1454 = vld [vmem:[%s5 + $0x84] sm:$0xf]
      %v1455 = vld [vmem:[%s5 + $0x88] sm:$0xf]
      %v1456 = vld [vmem:[%s5 + $0x8c] sm:$0xf]
      %v1457 = vld [vmem:[%s5 + $0x90] sm:$0xf]
      %v1458 = vld [vmem:[%s5 + $0x94] sm:$0xf]
      %v1459 = vld [vmem:[%s5 + $0x98] sm:$0xf]
      %v1460 = vld [vmem:[%s5 + $0x9c] sm:$0xf]
      %v1461 = vld [vmem:[%s5 + $0xa0] sm:$0xf]
      %v1462 = vld [vmem:[%s5 + $0xa4] sm:$0xf]
      %v1463 = vld [vmem:[%s5 + $0xa8] sm:$0xf]
      %v1464 = vld [vmem:[%s5 + $0xac] sm:$0xf]
      %v1465 = vld [vmem:[%s5 + $0xb0] sm:$0xf]
      %v1466 = vld [vmem:[%s5 + $0xb4] sm:$0xf]
      %v1467 = vld [vmem:[%s5 + $0xb8] sm:$0xf]
      %v1468 = vld [vmem:[%s5 + $0xbc] sm:$0xf]
      %v1469 = vld [vmem:[%s5 + $0xc0] sm:$0xf]
      %v1470 = vld [vmem:[%s5 + $0xc4] sm:$0xf]
      %v1471 = vld [vmem:[%s5 + $0xc8] sm:$0xf]
      %v1472 = vld [vmem:[%s5 + $0xcc] sm:$0xf]
      %v1473 = vld [vmem:[%s5 + $0xd0] sm:$0xf]
      %v1474 = vld [vmem:[%s5 + $0xd4] sm:$0xf]
      %v1475 = vld [vmem:[%s5 + $0xd8] sm:$0xf]
      %v1476 = vld [vmem:[%s5 + $0xdc] sm:$0xf]
      %v1477 = vld [vmem:[%s5 + $0xe0] sm:$0xf]
      %v1478 = vld [vmem:[%s5 + $0xe4] sm:$0xf]
      %v1479 = vld [vmem:[%s5 + $0xe8] sm:$0xf]
      %v1480 = vld [vmem:[%s5 + $0xec] sm:$0xf]
      %v1481 = vld [vmem:[%s5 + $0xf0] sm:$0xf]
      %v1482 = vld [vmem:[%s5 + $0xf4] sm:$0xf]
      %v1483 = vld [vmem:[%s5 + $0xf8] sm:$0xf]
      %v1484 = vld [vmem:[%s5 + $0xfc] sm:$0xf]
      %v1485 = vld [vmem:[%s5 + $0x100] sm:$0xf]
      %v1486 = vld [vmem:[%s5 + $0x104] sm:$0xf]
      %v1487 = vld [vmem:[%s5 + $0x108] sm:$0xf]
      %v1488 = vld [vmem:[%s5 + $0x10c] sm:$0xf]
      %v1489 = vld [vmem:[%s5 + $0x110] sm:$0xf]
      %v1490 = vld [vmem:[%s5 + $0x114] sm:$0xf]
      %v1491 = vld [vmem:[%s5 + $0x118] sm:$0xf]
      %v1492 = vld [vmem:[%s5 + $0x11c] sm:$0xf]
      %v1493 = vld [vmem:[%s6] sm:$0x1]
      %v1495 = vperm.slane %v1493, 0
      %v1506 = vunpack.c.l.b16 %v1412
      %v1507 = vunpack.c.h.b16 %v1412
      %v1508 = vunpack.c.l.b16 %v1413
      %v1509 = vunpack.c.h.b16 %v1413
      %v1510 = vunpack.c.l.b16 %v1414
      %v1511 = vunpack.c.l.b16 %v1415
      %v1512 = vunpack.c.h.b16 %v1415
      %v1513 = vunpack.c.l.b16 %v1416
      %v1514 = vunpack.c.h.b16 %v1416
      %v1515 = vunpack.c.l.b16 %v1417
      %v1516 = vunpack.c.l.b16 %v1418
      %v1517 = vunpack.c.h.b16 %v1418
      %v1518 = vunpack.c.l.b16 %v1419
      %v1519 = vunpack.c.h.b16 %v1419
      %v1520 = vunpack.c.l.b16 %v1420
      %v1521 = vpack.c.b16 %v1511, %v1506
      %v1522 = vpack.c.b16 %v1512, %v1507
      %v1523 = vpack.c.b16 %v1513, %v1508
      %v1524 = vpack.c.b16 %v1514, %v1509
      %v1525 = vpack.c.b16 %v1515, %v1510
      %v1526 = vpack.c.b16 %v1516, %v1516
      %v1527 = vpack.c.b16 %v1517, %v1517
      %v1528 = vpack.c.b16 %v1518, %v1518
      %v1529 = vpack.c.b16 %v1519, %v1519
      %v1530 = vpack.c.b16 %v1520, %v1520
      %v1611 = vunpack.c.l.b16 %v1421
      %v1612 = vunpack.c.l.b16 %v1422
      %v1613 = vunpack.c.l.b16 %v1423
      %v1614 = vunpack.c.l.b16 %v1424
      %v1615 = vunpack.c.l.b16 %v1425
      %v1616 = vunpack.c.l.b16 %v1426
      %v1617 = vunpack.c.l.b16 %v1427
      %v1618 = vunpack.c.l.b16 %v1428
      %v1619 = vunpack.c.l.b16 %v1429
      %v1620 = vunpack.c.l.b16 %v1430
      %v1621 = vunpack.c.l.b16 %v1431
      %v1622 = vunpack.c.l.b16 %v1432
      %v1623 = vunpack.c.l.b16 %v1433
      %v1624 = vunpack.c.l.b16 %v1434
      %v1625 = vunpack.c.l.b16 %v1435
      %v1626 = vunpack.c.l.b16 %v1436
      %v1627 = vunpack.c.l.b16 %v1437
      %v1628 = vunpack.c.l.b16 %v1438
      %v1629 = vunpack.c.l.b16 %v1439
      %v1630 = vunpack.c.l.b16 %v1440
      %v1631 = vunpack.c.l.b16 %v1441
      %v1632 = vunpack.c.l.b16 %v1442
      %v1633 = vunpack.c.l.b16 %v1443
      %v1634 = vunpack.c.l.b16 %v1444
      %v1635 = vunpack.c.l.b16 %v1445
      %v1636 = vunpack.c.l.b16 %v1446
      %v1637 = vunpack.c.l.b16 %v1447
      %v1638 = vunpack.c.l.b16 %v1448
      %v1639 = vunpack.c.l.b16 %v1449
      %v1640 = vunpack.c.l.b16 %v1450
      %v1641 = vunpack.c.l.b16 %v1451
      %v1642 = vunpack.c.l.b16 %v1452
      %v1643 = vunpack.c.l.b16 %v1453
      %v1644 = vunpack.c.l.b16 %v1454
      %v1645 = vunpack.c.l.b16 %v1455
      %v1646 = vunpack.c.l.b16 %v1456
      %v1647 = vunpack.c.l.b16 %v1457
      %v1648 = vunpack.c.l.b16 %v1458
      %v1649 = vunpack.c.l.b16 %v1459
      %v1650 = vunpack.c.l.b16 %v1460
      %v1651 = vunpack.c.l.b16 %v1461
      %v1652 = vunpack.c.l.b16 %v1462
      %v1653 = vunpack.c.l.b16 %v1463
      %v1654 = vunpack.c.l.b16 %v1464
      %v1655 = vunpack.c.l.b16 %v1465
      %v1656 = vunpack.c.l.b16 %v1466
      %v1657 = vunpack.c.l.b16 %v1467
      %v1658 = vunpack.c.l.b16 %v1468
      %v1659 = vunpack.c.l.b16 %v1469
      %v1660 = vunpack.c.l.b16 %v1470
      %v1661 = vunpack.c.l.b16 %v1471
      %v1662 = vunpack.c.l.b16 %v1472
      %v1663 = vunpack.c.l.b16 %v1473
      %v1664 = vunpack.c.l.b16 %v1474
      %v1665 = vunpack.c.l.b16 %v1475
      %v1666 = vunpack.c.l.b16 %v1476
      %v1667 = vunpack.c.l.b16 %v1477
      %v1668 = vunpack.c.l.b16 %v1478
      %v1669 = vunpack.c.l.b16 %v1479
      %v1670 = vunpack.c.l.b16 %v1480
      %v1671 = vunpack.c.l.b16 %v1481
      %v1672 = vunpack.c.l.b16 %v1482
      %v1673 = vunpack.c.l.b16 %v1483
      %v1674 = vunpack.c.l.b16 %v1484
      %v1675 = vunpack.c.l.b16 %v1485
      %v1676 = vunpack.c.l.b16 %v1486
      %v1677 = vunpack.c.l.b16 %v1487
      %v1678 = vunpack.c.l.b16 %v1488
      %v1679 = vunpack.c.l.b16 %v1489
      %v1680 = vunpack.c.l.b16 %v1490
      %v1681 = vunpack.c.l.b16 %v1491
      %v1682 = vunpack.c.l.b16 %v1492
      %v1683 = vpack.c.b16 %v1612, %v1611
      %v1684 = vpack.c.b16 %v1614, %v1613
      %v1685 = vpack.c.b16 %v1616, %v1615
      %v1686 = vpack.c.b16 %v1618, %v1617
      %v1687 = vpack.c.b16 %v1620, %v1619
      %v1688 = vpack.c.b16 %v1622, %v1621
      %v1689 = vpack.c.b16 %v1624, %v1623
      %v1690 = vpack.c.b16 %v1626, %v1625
      %v1691 = vpack.c.b16 %v1628, %v1627
      %v1692 = vpack.c.b16 %v1630, %v1629
      %v1693 = vpack.c.b16 %v1632, %v1631
      %v1694 = vpack.c.b16 %v1634, %v1633
      %v1695 = vpack.c.b16 %v1636, %v1635
      %v1696 = vpack.c.b16 %v1638, %v1637
      %v1697 = vpack.c.b16 %v1640, %v1639
      %v1698 = vpack.c.b16 %v1642, %v1641
      %v1699 = vpack.c.b16 %v1644, %v1643
      %v1700 = vpack.c.b16 %v1646, %v1645
      %v1701 = vpack.c.b16 %v1648, %v1647
      %v1702 = vpack.c.b16 %v1650, %v1649
      %v1703 = vpack.c.b16 %v1652, %v1651
      %v1704 = vpack.c.b16 %v1654, %v1653
      %v1705 = vpack.c.b16 %v1656, %v1655
      %v1706 = vpack.c.b16 %v1658, %v1657
      %v1707 = vpack.c.b16 %v1660, %v1659
      %v1708 = vpack.c.b16 %v1662, %v1661
      %v1709 = vpack.c.b16 %v1664, %v1663
      %v1710 = vpack.c.b16 %v1666, %v1665
      %v1711 = vpack.c.b16 %v1668, %v1667
      %v1712 = vpack.c.b16 %v1670, %v1669
      %v1713 = vpack.c.b16 %v1672, %v1671
      %v1714 = vpack.c.b16 %v1674, %v1673
      %v1715 = vpack.c.b16 %v1676, %v1675
      %v1716 = vpack.c.b16 %v1678, %v1677
      %v1717 = vpack.c.b16 %v1680, %v1679
      %v1718 = vpack.c.b16 %v1682, %v1681
      %v1756 = vsel %vm630, %v1525, 0
      %v1759 = vsel %vm630, %v1530, 0
      %1761 = vmatpush.bf16.msra.mxu0 %v1690
      %1762 = vmatpush.bf16.msra.mxu0 %v1689
      %1763 = vmatpush.bf16.msra.mxu0 %v1688
      %1764 = vmatpush.bf16.msra.mxu0 %v1687
      %1765 = vmatpush.bf16.msra.mxu0 %v1686
      %1766 = vmatpush.bf16.msra.mxu0 %v1685
      %1767 = vmatpush.bf16.msra.mxu0 %v1684
      %1768 = vmatpush.bf16.msra.mxu0 %v1683
      %1769 = vmatmul.bf16.gmra.mxu0 %v1521
      %v1770 = vpop.f32.mrf.mxu0
      %v1771 = vadd.f32 %v1495, %v1770
      %v1772 = vpop.f32.mrf.mxu0
      %v1773 = vadd.f32 %v1495, %v1772
      %1774 = vmatmul.bf16.gmra.mxu0 %v1526
      %v1775 = vpop.f32.mrf.mxu0
      %v1776 = vadd.f32 %v1495, %v1775
      %v1777 = vpop.f32.mrf.mxu0
      %1778 = vdwg.mxu0
      %1779 = vmatpush.bf16.msra.mxu0 %v1698
      %1780 = vmatpush.bf16.msra.mxu0 %v1697
      %1781 = vmatpush.bf16.msra.mxu0 %v1696
      %1782 = vmatpush.bf16.msra.mxu0 %v1695
      %1783 = vmatpush.bf16.msra.mxu0 %v1694
      %1784 = vmatpush.bf16.msra.mxu0 %v1693
      %1785 = vmatpush.bf16.msra.mxu0 %v1692
      %1786 = vmatpush.bf16.msra.mxu0 %v1691
      %1787 = vmatmul.bf16.gmra.mxu0 %v1522
      %v1788 = vpop.f32.mrf.mxu0
      %v1789 = vadd.f32 %v1771, %v1788
      %v1790 = vpop.f32.mrf.mxu0
      %v1791 = vadd.f32 %v1773, %v1790
      %1792 = vmatmul.bf16.gmra.mxu0 %v1527
      %v1793 = vpop.f32.mrf.mxu0
      %v1794 = vadd.f32 %v1776, %v1793
      %v1795 = vpop.f32.mrf.mxu0
      %1796 = vdwg.mxu0
      %1797 = vmatpush.bf16.msra.mxu0 %v1706
      %1798 = vmatpush.bf16.msra.mxu0 %v1705
      %1799 = vmatpush.bf16.msra.mxu0 %v1704
      %1800 = vmatpush.bf16.msra.mxu0 %v1703
      %1801 = vmatpush.bf16.msra.mxu0 %v1702
      %1802 = vmatpush.bf16.msra.mxu0 %v1701
      %1803 = vmatpush.bf16.msra.mxu0 %v1700
      %1804 = vmatpush.bf16.msra.mxu0 %v1699
      %1805 = vmatmul.bf16.gmra.mxu0 %v1523
      %v1806 = vpop.f32.mrf.mxu0
      %v1807 = vadd.f32 %v1789, %v1806
      %v1808 = vpop.f32.mrf.mxu0
      %v1809 = vadd.f32 %v1791, %v1808
      %1810 = vmatmul.bf16.gmra.mxu0 %v1528
      %v1811 = vpop.f32.mrf.mxu0
      %v1812 = vadd.f32 %v1794, %v1811
      %v1813 = vpop.f32.mrf.mxu0
      %1814 = vdwg.mxu0
      %1815 = vmatpush.bf16.msra.mxu0 %v1714
      %1816 = vmatpush.bf16.msra.mxu0 %v1713
      %1817 = vmatpush.bf16.msra.mxu0 %v1712
      %1818 = vmatpush.bf16.msra.mxu0 %v1711
      %1819 = vmatpush.bf16.msra.mxu0 %v1710
      %1820 = vmatpush.bf16.msra.mxu0 %v1709
      %1821 = vmatpush.bf16.msra.mxu0 %v1708
      %1822 = vmatpush.bf16.msra.mxu0 %v1707
      %1823 = vmatmul.bf16.gmra.mxu0 %v1524
      %v1824 = vpop.f32.mrf.mxu0
      %v1825 = vadd.f32 %v1807, %v1824
      %v1826 = vpop.f32.mrf.mxu0
      %v1827 = vadd.f32 %v1809, %v1826
      %1828 = vmatmul.bf16.gmra.mxu0 %v1529
      %v1829 = vpop.f32.mrf.mxu0
      %v1830 = vadd.f32 %v1812, %v1829
      %v1831 = vpop.f32.mrf.mxu0
      %1832 = vdwg.mxu0
      %1833 = vmatpush.bf16.msra.mxu0 0
      %1834 = vmatpush.bf16.msra.mxu0 0
      %1835 = vmatpush.bf16.msra.mxu0 0
      %1836 = vmatpush.bf16.msra.mxu0 0
      %1837 = vmatpush.bf16.msra.mxu0 %v1718
      %1838 = vmatpush.bf16.msra.mxu0 %v1717
      %1839 = vmatpush.bf16.msra.mxu0 %v1716
      %1840 = vmatpush.bf16.msra.mxu0 %v1715
      %1841 = vmatmul.bf16.gmra.mxu0 %v1756
      %v1842 = vpop.f32.mrf.mxu0
      %v1843 = vadd.f32 %v1825, %v1842
      %v1844 = vpop.f32.mrf.mxu0
      %v1845 = vadd.f32 %v1827, %v1844
      %1846 = vmatmul.bf16.gmra.mxu0 %v1759
      %v1847 = vpop.f32.mrf.mxu0
      %v1848 = vadd.f32 %v1830, %v1847
      %v1849 = vpop.f32.mrf.mxu0
      %1850 = vdwg.mxu0
      %v1851 = vmax.f32 %v1843, 0.0
      %v1852 = vmax.f32 %v1845, 0.0
      %v1853 = vmax.f32 %v1848, 0.0
      %1854 = vst.msk [vmem:[%s280] sm:$0xff] %vm630, %v1851
      %1855 = vst.msk [vmem:[%s280 + $0x8] sm:$0xff] %vm630, %v1852
      %vm1856 = vcmask 518144
      %1857 = vst.msk [vmem:[%s280 + $0x10] sm:$0x7] %vm1856, %v1853
      %p1858 = scmp.lt.s32.totalorder %s18, 1
      %s1859 = scalar_select %p1858, %s18, 1
      %s1860 = smul.addr %s1859, 3
      %s1861 = smul.addr %s1860, 8
      %s1862 = scalar_lea.vmem %s7, %s1861
      // Predicated region
      $region49: #{cnn_small_forward.1} parent=47 // pred_check
        %p1863 = pneg %p188
      $region50: #{cnn_small_forward.1} parent=47 // pred_check_branch
        %1865 = sbr.rel (%p1863) target = $region52
      $region51: #{cnn_small_forward.1} parent=47 // pred_region
        _
      $region52: #{cnn_small_forward.1} parent=47 // pred_fallthru
        _
    $region48: #{cnn_small_forward.1} parent=5 // pred_fallthru
      _
    %p1866 = scmp.le.s32.totalorder 2, %s13
    // Predicated region
    $region53: #{cnn_small_forward.1} parent=5 // pred_check
      %p1867 = pneg %p1866
    $region54: #{cnn_small_forward.1} parent=5 // pred_check_branch
      %1869 = sbr.rel (%p1867) target = $region56
    $region55: #{cnn_small_forward.1} parent=5 // pred_region
      %s1870 = ssub.s32 %s13, 2
      // Predicated region
      $region57: #{cnn_small_forward.1} parent=55 // pred_check
        %p1871 = pneg %p194
      $region58: #{cnn_small_forward.1} parent=55 // pred_check_branch
        %1873 = sbr.rel (%p1871) target = $region60
      $region59: #{cnn_small_forward.1} parent=55 // pred_region
        %p1874 = scmp.lt.s32.totalorder %s19, 1
        %s1875 = scalar_select %p1874, %s19, 1
        %s1876 = smul.addr %s1875, 3
        %s1877 = smul.addr %s1876, 8
        %s1878 = scalar_lea.vmem %s7, %s1877
      $region60: #{cnn_small_forward.1} parent=55 // pred_fallthru
        _
    $region56: #{cnn_small_forward.1} parent=5 // pred_fallthru
      _
  $region6: #{cnn_small_forward.1} parent=0 // loop_footer
    %s17 = sadd.s32 1, %s13
  $region7: #{cnn_small_forward.1} parent=0 // loop_footer_branch
    %12 = sbr.rel target = $region3
  $region8: #{cnn_small_forward.1} parent=0 // loop_exit
    _

</llo_original>
